<compile_context>
chip_gen: v7x
topology: tpu7x:2x2x1
jax: 0.10.0
libtpu: 0.0.40
codegen_flags: <defaults>
</compile_context>

<pallas_src>
import jax
import jax.numpy as jnp
from jax.experimental import pallas as pl
from jax.experimental.pallas import tpu as pltpu


# -----------------------------------------------------------------------------
# Pallas kernel: fused 3-layer MLP  (Linear->ReLU->Linear->ReLU->Linear)
# -----------------------------------------------------------------------------
def _mlp_kernel(x_ref, w0_ref, b0_ref, w1_ref, b1_ref, w2_ref, b2_ref, o_ref):
    cd = w0_ref.dtype
    # Cast the x tile in VMEM (no extra HBM cast pass in the wrapper).
    x = x_ref[...].astype(cd)
    # hidden layer 0 (MXU matmul, f32 accumulation; bias + ReLU in f32)
    h = jnp.dot(x, w0_ref[...], preferred_element_type=jnp.float32)
    h = jnp.maximum(h + b0_ref[...], 0.0)
    # hidden layer 1
    h = jnp.dot(h.astype(cd), w1_ref[...], preferred_element_type=jnp.float32)
    h = jnp.maximum(h + b1_ref[...], 0.0)
    # output projection (no activation on the encoder head)
    out = jnp.dot(h.astype(cd), w2_ref[...], preferred_element_type=jnp.float32)
    out = out + b2_ref[...]
    o_ref[...] = out.astype(o_ref.dtype)
    # TODO(synk): if_bn / if_dp branches of FCNet_H_class (BatchNorm1d, Dropout)
    # are disabled by default in the module and are not implemented here.
    # TODO(synk): on v6e/v7x the bias+ReLU epilogue could run in bf16 (free VALU
    # win); kept in f32 so the same kernel stays optimal on v5e (no bf16 VPU).


# -----------------------------------------------------------------------------
# Helpers
# -----------------------------------------------------------------------------
def _round_up(x, m):
    return ((x + m - 1) // m) * m


def _cdiv(a, b):
    return -(-a // b)


def _pad2(a, rows, cols):
    return jnp.pad(a, ((0, rows - a.shape[0]), (0, cols - a.shape[1])))


def _vmem_ceiling_bytes():
    """Physical VMEM minus headroom (48 MiB on v7x, ~112 MiB on v5e/v6e)."""
    try:
        cap = int(pltpu.get_tpu_info().vmem_capacity_bytes)
    except Exception:
        cap = 64 << 20
    return max(cap - (16 << 20), 32 << 20)


def prepare_params(params, compute_dtype=jnp.bfloat16):
    """One-time weight/bias cast + lane-dense padding (hoisted off the hot path).

    Hidden widths are zero-padded to multiples of 128 so intermediates stay
    lane-dense; the output width (h_dim) is left as-is (full-array block).
    """
    (w0, b0), (w1, b1), (w2, b2) = params
    feat, h0 = w0.shape
    h1, h_dim = w1.shape[1], w2.shape[1]
    h0p, h1p = _round_up(h0, 128), _round_up(h1, 128)

    w0p = _pad2(w0.astype(compute_dtype), feat, h0p)
    w1p = _pad2(w1.astype(compute_dtype), h0p, h1p)   # zero-padded rows -> exact
    w2p = _pad2(w2.astype(compute_dtype), h1p, h_dim)
    b0p = _pad2(b0.astype(jnp.float32).reshape(1, -1), 1, h0p)
    b1p = _pad2(b1.astype(jnp.float32).reshape(1, -1), 1, h1p)
    b2p = b2.astype(jnp.float32).reshape(1, -1)
    return (w0p, b0p, w1p, b1p, w2p, b2p)


# -----------------------------------------------------------------------------
# Forward wrapper
# -----------------------------------------------------------------------------
def _forward_impl(x, prepared, *, batch_tile, out_dtype, single_buffer_weights):
    w0p, b0p, w1p, b1p, w2p, b2p = prepared
    n, feat = x.shape
    assert feat == w0p.shape[0], "x feature dim mismatch with prepared params"
    h0p, h1p, h_dim = w0p.shape[1], w1p.shape[1], w2p.shape[1]

    compute_dtype = w0p.dtype
    out_dtype = out_dtype or compute_dtype  # bf16 output by default in bf16 config

    x_item = jnp.dtype(x.dtype).itemsize
    w_item = jnp.dtype(compute_dtype).itemsize
    o_item = jnp.dtype(out_dtype).itemsize

    # ---- batch tiling: big tiles, dtype-aligned, >= 2 grid steps when possible
    sub_mult = max(8, 32 // min(x_item, w_item, o_item))  # 8 f32 / 16 bf16 / 32 int8
    bt = min(int(batch_tile), n)
    if _cdiv(n, max(bt, 1)) < 2 and n > sub_mult:
        bt = _cdiv(n, 2)                    # give both v7x TensorCores work
    bt = max(sub_mult, _round_up(bt, sub_mult))
    grid = (_cdiv(n, bt),)                  # ragged last block: masked out-store

    # ---- VMEM budget ----------------------------------------------------------
    nbuf_w = 1 if single_buffer_weights else 2
    weight_bytes = ((w0p.size + w1p.size + w2p.size) * w_item
                    + (b0p.size + b1p.size + b2p.size) * 4)
    io_bytes = 2 * bt * feat * x_item + 2 * bt * h_dim * o_item   # double-buffered I/O
    inter_bytes = bt * (h0p + h1p + h_dim) * (4 + w_item)         # f32 temps + recasts
    vmem_needed = nbuf_w * weight_bytes + io_bytes + inter_bytes
    vmem_limit = int(min(max(2 * vmem_needed, 16 << 20), _vmem_ceiling_bytes()))

    # ---- BlockSpecs -----------------------------------------------------------
    def _const_spec(shape):
        idx = lambda i: (0, 0)
        if single_buffer_weights:
            # Constant block index across the grid -> one resident buffer is enough.
            return pl.BlockSpec(shape, idx, pipeline_mode=pl.Buffered(1))
        return pl.BlockSpec(shape, idx)

    return pl.pallas_call(
        _mlp_kernel,
        out_shape=jax.ShapeDtypeStruct((n, h_dim), out_dtype),
        grid_spec=pltpu.PrefetchScalarGridSpec(
            num_scalar_prefetch=0,
            grid=grid,
            in_specs=[
                pl.BlockSpec((bt, feat), lambda i: (i, 0)),        # x tile
                _const_spec((feat, h0p)), _const_spec((1, h0p)),
                _const_spec((h0p, h1p)), _const_spec((1, h1p)),
                _const_spec((h1p, h_dim)), _const_spec((1, h_dim)),
            ],
            out_specs=pl.BlockSpec((bt, h_dim), lambda i: (i, 0)),
        ),
        compiler_params=pltpu.CompilerParams(
            dimension_semantics=("parallel",),
            vmem_limit_bytes=vmem_limit,
        ),
    )(x, w0p, b0p, w1p, b1p, w2p, b2p)


def contrastive_discriminator_forward(x, prepared_params, *, batch_tile=1024,
                                      out_dtype=None, single_buffer_weights=True):
    """Fused MLP encoder forward.  x: (N, feature_channel), any float dtype."""
    if single_buffer_weights:
        try:
            return _forward_impl(x, prepared_params, batch_tile=batch_tile,
                                 out_dtype=out_dtype, single_buffer_weights=True)
        except Exception:
            # pl.Buffered(1) single-buffering unsupported on this jax build:
            # fall back to default double-buffered weight specs (eager path).
            pass
    return _forward_impl(x, prepared_params, batch_tile=batch_tile,
                         out_dtype=out_dtype, single_buffer_weights=False)


# -----------------------------------------------------------------------------
# Deterministic parameter init (PyTorch nn.Linear default: U(-1/sqrt(fan_in), +))
# -----------------------------------------------------------------------------
def init_params(key, feature_channel, hidden_list, h_dim):
    dims = [feature_channel] + list(hidden_list) + [h_dim]
    params = []
    for i in range(len(dims) - 1):
        fan_in, fan_out = dims[i], dims[i + 1]
        key, kw, kb = jax.random.split(key, 3)
        bound = 1.0 / jnp.sqrt(fan_in)
        w = jax.random.uniform(kw, (fan_in, fan_out), jnp.float32, -bound, bound)
        b = jax.random.uniform(kb, (1, fan_out), jnp.float32, -bound, bound)
        params.append((w, b))
    return params


# Pure-JAX reference (same dtype policy: cast operands, f32 accumulation).
def reference_forward(x, params, compute_dtype=jnp.float32):
    (w0, b0), (w1, b1), (w2, b2) = params
    cd = compute_dtype
    h = jnp.dot(x.astype(cd), w0.astype(cd), preferred_element_type=jnp.float32)
    h = jnp.maximum(h + b0, 0.0)
    h = jnp.dot(h.astype(cd), w1.astype(cd), preferred_element_type=jnp.float32)
    h = jnp.maximum(h + b1, 0.0)
    out = jnp.dot(h.astype(cd), w2.astype(cd), preferred_element_type=jnp.float32)
    return out + b2


if __name__ == "__main__":
    # Small, module-consistent shapes:
    #   batch N=50 (non-multiple of the tile -> exercises the ragged last block),
    #   feature_channel=32, hidden_list=[64, 64] (padded to 128 lanes), h_dim=128.
    feature_channel = 32
    hidden_list = [64, 64]
    h_dim = 128
    N = 50

    key = jax.random.PRNGKey(0)
    key, kx = jax.random.split(key)
    x = jax.random.normal(kx, (N, feature_channel), jnp.float32)
    params = init_params(key, feature_channel, hidden_list, h_dim)

    # 1) f32 compute path (default tile auto-shrunk to give a 2-step grid).
    prepared_f32 = prepare_params(params, compute_dtype=jnp.float32)
    out_f32 = contrastive_discriminator_forward(x, prepared_f32)
    out_f32 = jax.block_until_ready(out_f32)
    ref_f32 = reference_forward(x, params, compute_dtype=jnp.float32)
    assert out_f32.shape == (N, h_dim)
    assert jnp.allclose(out_f32, ref_f32, atol=2e-3, rtol=2e-3), "f32 mismatch"

    # 2) bf16 production path: bf16 weights, in-kernel x cast, bf16 output,
    #    explicit small tile -> multi-step grid with a ragged last block.
    prepared_bf16 = prepare_params(params, compute_dtype=jnp.bfloat16)
    out_bf16 = contrastive_discriminator_forward(x, prepared_bf16, batch_tile=16)
    out_bf16 = jax.block_until_ready(out_bf16)
    assert out_bf16.shape == (N, h_dim)
    assert out_bf16.dtype == jnp.bfloat16
    out_bf16_f32 = out_bf16.astype(jnp.float32)
    ref_bf16 = reference_forward(x, params, compute_dtype=jnp.bfloat16)
    assert jnp.allclose(out_bf16_f32, ref_bf16, atol=3e-2, rtol=3e-2), "bf16 mismatch"
    assert jnp.allclose(out_bf16_f32, ref_f32, atol=2e-1, rtol=2e-1), "bf16 vs f32 drift"

    print("KERNEL_OK")
</pallas_src>

<mosaic_0001>
module attributes {stable_mosaic.version = 11 : i64} {
  func.func @_mlp_kernel(%arg0: i32, %arg1: memref<32x32xf32, #tpu.memory_space<vmem>>, %arg2: memref<32x128xf32, #tpu.memory_space<vmem>>, %arg3: memref<1x128xf32, #tpu.memory_space<vmem>>, %arg4: memref<128x128xf32, #tpu.memory_space<vmem>>, %arg5: memref<1x128xf32, #tpu.memory_space<vmem>>, %arg6: memref<128x128xf32, #tpu.memory_space<vmem>>, %arg7: memref<1x128xf32, #tpu.memory_space<vmem>>, %arg8: memref<32x128xf32, #tpu.memory_space<vmem>>) attributes {dimension_semantics = [#tpu.dimension_semantics<parallel>], iteration_bounds = array<i64: 2>, scalar_prefetch = 0 : i64, scratch_operands = 0 : i64, tpu.core_type = #tpu.core_type<tc>, window_params = [{transform_indices = @transform_0, window_bounds = array<i64: 32, 32>}, {pipeline_mode = #tpu.pipeline_mode<synchronous>, transform_indices = @transform_1, window_bounds = array<i64: 32, 128>}, {pipeline_mode = #tpu.pipeline_mode<synchronous>, transform_indices = @transform_2, window_bounds = array<i64: 1, 128>}, {pipeline_mode = #tpu.pipeline_mode<synchronous>, transform_indices = @transform_3, window_bounds = array<i64: 128, 128>}, {pipeline_mode = #tpu.pipeline_mode<synchronous>, transform_indices = @transform_4, window_bounds = array<i64: 1, 128>}, {pipeline_mode = #tpu.pipeline_mode<synchronous>, transform_indices = @transform_5, window_bounds = array<i64: 128, 128>}, {pipeline_mode = #tpu.pipeline_mode<synchronous>, transform_indices = @transform_6, window_bounds = array<i64: 1, 128>}, {transform_indices = @transform_7, window_bounds = array<i64: 32, 128>}]} {
    %c0 = arith.constant 0 : index
    %c0_0 = arith.constant 0 : index
    %0 = vector.load %arg1[%c0, %c0_0] : memref<32x32xf32, #tpu.memory_space<vmem>>, vector<32x32xf32>
    %c0_1 = arith.constant 0 : index
    %c0_2 = arith.constant 0 : index
    %1 = vector.load %arg2[%c0_1, %c0_2] : memref<32x128xf32, #tpu.memory_space<vmem>>, vector<32x128xf32>
    %cst = arith.constant dense<0.000000e+00> : vector<32x128xf32>
    %2 = tpu.matmul %0, %1, %cst {dimension_numbers = #tpu.dot_dimension_numbers<[1], [0], [0], [1], [0, 0, 1, 1], [], []>} : vector<32x32xf32>, vector<32x128xf32>, vector<32x128xf32> -> vector<32x128xf32>
    %c0_3 = arith.constant 0 : index
    %c0_4 = arith.constant 0 : index
    %3 = vector.load %arg3[%c0_3, %c0_4] : memref<1x128xf32, #tpu.memory_space<vmem>>, vector<1x128xf32>
    %4 = vector.broadcast %3 : vector<1x128xf32> to vector<32x128xf32>
    %5 = arith.addf %2, %4 : vector<32x128xf32>
    %cst_5 = arith.constant 0.000000e+00 : f32
    %6 = vector.broadcast %cst_5 : f32 to vector<32x128xf32>
    %7 = arith.maximumf %5, %6 : vector<32x128xf32>
    %c0_6 = arith.constant 0 : index
    %c0_7 = arith.constant 0 : index
    %8 = vector.load %arg4[%c0_6, %c0_7] : memref<128x128xf32, #tpu.memory_space<vmem>>, vector<128x128xf32>
    %cst_8 = arith.constant dense<0.000000e+00> : vector<32x128xf32>
    %9 = tpu.matmul %7, %8, %cst_8 {dimension_numbers = #tpu.dot_dimension_numbers<[1], [0], [0], [1], [0, 0, 1, 1], [], []>} : vector<32x128xf32>, vector<128x128xf32>, vector<32x128xf32> -> vector<32x128xf32>
    %c0_9 = arith.constant 0 : index
    %c0_10 = arith.constant 0 : index
    %10 = vector.load %arg5[%c0_9, %c0_10] : memref<1x128xf32, #tpu.memory_space<vmem>>, vector<1x128xf32>
    %11 = vector.broadcast %10 : vector<1x128xf32> to vector<32x128xf32>
    %12 = arith.addf %9, %11 : vector<32x128xf32>
    %cst_11 = arith.constant 0.000000e+00 : f32
    %13 = vector.broadcast %cst_11 : f32 to vector<32x128xf32>
    %14 = arith.maximumf %12, %13 : vector<32x128xf32>
    %c0_12 = arith.constant 0 : index
    %c0_13 = arith.constant 0 : index
    %15 = vector.load %arg6[%c0_12, %c0_13] : memref<128x128xf32, #tpu.memory_space<vmem>>, vector<128x128xf32>
    %cst_14 = arith.constant dense<0.000000e+00> : vector<32x128xf32>
    %16 = tpu.matmul %14, %15, %cst_14 {dimension_numbers = #tpu.dot_dimension_numbers<[1], [0], [0], [1], [0, 0, 1, 1], [], []>} : vector<32x128xf32>, vector<128x128xf32>, vector<32x128xf32> -> vector<32x128xf32>
    %c0_15 = arith.constant 0 : index
    %c0_16 = arith.constant 0 : index
    %17 = vector.load %arg7[%c0_15, %c0_16] : memref<1x128xf32, #tpu.memory_space<vmem>>, vector<1x128xf32>
    %18 = vector.broadcast %17 : vector<1x128xf32> to vector<32x128xf32>
    %19 = arith.addf %16, %18 : vector<32x128xf32>
    %c0_17 = arith.constant 0 : index
    %c0_18 = arith.constant 0 : index
    %20 = vector.load %arg8[%c0_17, %c0_18] : memref<32x128xf32, #tpu.memory_space<vmem>>, vector<32x128xf32>
    tpu.vector_store %arg8[%c0_17, %c0_18], %19 {strides = array<i32>} : memref<32x128xf32, #tpu.memory_space<vmem>>, vector<32x128xf32>,
    return
  }
  func.func @transform_0(%arg0: i32) -> (i32, i32) {
    %c0_i32 = arith.constant 0 : i32
    %c0_i32_0 = arith.constant 0 : i32
    return %arg0, %c0_i32 : i32, i32
  }
  func.func @transform_1(%arg0: i32) -> (i32, i32) {
    %c0_i32 = arith.constant 0 : i32
    %c0_i32_0 = arith.constant 0 : i32
    %c0_i32_1 = arith.constant 0 : i32
    return %c0_i32, %c0_i32_0 : i32, i32
  }
  func.func @transform_2(%arg0: i32) -> (i32, i32) {
    %c0_i32 = arith.constant 0 : i32
    %c0_i32_0 = arith.constant 0 : i32
    %c0_i32_1 = arith.constant 0 : i32
    return %c0_i32, %c0_i32_0 : i32, i32
  }
  func.func @transform_3(%arg0: i32) -> (i32, i32) {
    %c0_i32 = arith.constant 0 : i32
    %c0_i32_0 = arith.constant 0 : i32
    %c0_i32_1 = arith.constant 0 : i32
    return %c0_i32, %c0_i32_0 : i32, i32
  }
  func.func @transform_4(%arg0: i32) -> (i32, i32) {
    %c0_i32 = arith.constant 0 : i32
    %c0_i32_0 = arith.constant 0 : i32
    %c0_i32_1 = arith.constant 0 : i32
    return %c0_i32, %c0_i32_0 : i32, i32
  }
  func.func @transform_5(%arg0: i32) -> (i32, i32) {
    %c0_i32 = arith.constant 0 : i32
    %c0_i32_0 = arith.constant 0 : i32
    %c0_i32_1 = arith.constant 0 : i32
    return %c0_i32, %c0_i32_0 : i32, i32
  }
  func.func @transform_6(%arg0: i32) -> (i32, i32) {
    %c0_i32 = arith.constant 0 : i32
    %c0_i32_0 = arith.constant 0 : i32
    %c0_i32_1 = arith.constant 0 : i32
    return %c0_i32, %c0_i32_0 : i32, i32
  }
  func.func @transform_7(%arg0: i32) -> (i32, i32) {
    %c0_i32 = arith.constant 0 : i32
    %c0_i32_0 = arith.constant 0 : i32
    return %arg0, %c0_i32 : i32, i32
  }
}

module attributes {stable_mosaic.version = 11 : i64} {
  func.func @_mlp_kernel(%arg0: i32, %arg1: memref<32x32xf32, #tpu.memory_space<vmem>>, %arg2: memref<32x128xf32, #tpu.memory_space<vmem>>, %arg3: memref<1x128xf32, #tpu.memory_space<vmem>>, %arg4: memref<128x128xf32, #tpu.memory_space<vmem>>, %arg5: memref<1x128xf32, #tpu.memory_space<vmem>>, %arg6: memref<128x128xf32, #tpu.memory_space<vmem>>, %arg7: memref<1x128xf32, #tpu.memory_space<vmem>>, %arg8: memref<32x128xf32, #tpu.memory_space<vmem>>) attributes {dimension_semantics = [#tpu.dimension_semantics<parallel>], iteration_bounds = array<i64: 2>, scalar_prefetch = 0 : i64, scratch_operands = 0 : i64, tpu.core_type = #tpu.core_type<tc>, window_params = [{transform_indices = @transform_0, window_bounds = array<i64: 32, 32>}, {pipeline_mode = #tpu.pipeline_mode<synchronous>, transform_indices = @transform_1, window_bounds = array<i64: 32, 128>}, {pipeline_mode = #tpu.pipeline_mode<synchronous>, transform_indices = @transform_2, window_bounds = array<i64: 1, 128>}, {pipeline_mode = #tpu.pipeline_mode<synchronous>, transform_indices = @transform_3, window_bounds = array<i64: 128, 128>}, {pipeline_mode = #tpu.pipeline_mode<synchronous>, transform_indices = @transform_4, window_bounds = array<i64: 1, 128>}, {pipeline_mode = #tpu.pipeline_mode<synchronous>, transform_indices = @transform_5, window_bounds = array<i64: 128, 128>}, {pipeline_mode = #tpu.pipeline_mode<synchronous>, transform_indices = @transform_6, window_bounds = array<i64: 1, 128>}, {transform_indices = @transform_7, window_bounds = array<i64: 32, 128>}]} {
    %c0 = arith.constant 0 : index
    %c0_0 = arith.constant 0 : index
    %0 = vector.load %arg1[%c0, %c0_0] : memref<32x32xf32, #tpu.memory_space<vmem>>, vector<32x32xf32>
    %c0_1 = arith.constant 0 : index
    %c0_2 = arith.constant 0 : index
    %1 = vector.load %arg2[%c0_1, %c0_2] : memref<32x128xf32, #tpu.memory_space<vmem>>, vector<32x128xf32>
    %cst = arith.constant dense<0.000000e+00> : vector<32x128xf32>
    %2 = tpu.matmul %0, %1, %cst {dimension_numbers = #tpu.dot_dimension_numbers<[1], [0], [0], [1], [0, 0, 1, 1], [], []>} : vector<32x32xf32>, vector<32x128xf32>, vector<32x128xf32> -> vector<32x128xf32>
    %c0_3 = arith.constant 0 : index
    %c0_4 = arith.constant 0 : index
    %3 = vector.load %arg3[%c0_3, %c0_4] : memref<1x128xf32, #tpu.memory_space<vmem>>, vector<1x128xf32>
    %4 = vector.broadcast %3 : vector<1x128xf32> to vector<32x128xf32>
    %5 = arith.addf %2, %4 : vector<32x128xf32>
    %cst_5 = arith.constant 0.000000e+00 : f32
    %6 = vector.broadcast %cst_5 : f32 to vector<32x128xf32>
    %7 = arith.maximumf %5, %6 : vector<32x128xf32>
    %c0_6 = arith.constant 0 : index
    %c0_7 = arith.constant 0 : index
    %8 = vector.load %arg4[%c0_6, %c0_7] : memref<128x128xf32, #tpu.memory_space<vmem>>, vector<128x128xf32>
    %cst_8 = arith.constant dense<0.000000e+00> : vector<32x128xf32>
    %9 = tpu.matmul %7, %8, %cst_8 {dimension_numbers = #tpu.dot_dimension_numbers<[1], [0], [0], [1], [0, 0, 1, 1], [], []>} : vector<32x128xf32>, vector<128x128xf32>, vector<32x128xf32> -> vector<32x128xf32>
    %c0_9 = arith.constant 0 : index
    %c0_10 = arith.constant 0 : index
    %10 = vector.load %arg5[%c0_9, %c0_10] : memref<1x128xf32, #tpu.memory_space<vmem>>, vector<1x128xf32>
    %11 = vector.broadcast %10 : vector<1x128xf32> to vector<32x128xf32>
    %12 = arith.addf %9, %11 : vector<32x128xf32>
    %cst_11 = arith.constant 0.000000e+00 : f32
    %13 = vector.broadcast %cst_11 : f32 to vector<32x128xf32>
    %14 = arith.maximumf %12, %13 : vector<32x128xf32>
    %c0_12 = arith.constant 0 : index
    %c0_13 = arith.constant 0 : index
    %15 = vector.load %arg6[%c0_12, %c0_13] : memref<128x128xf32, #tpu.memory_space<vmem>>, vector<128x128xf32>
    %cst_14 = arith.constant dense<0.000000e+00> : vector<32x128xf32>
    %16 = tpu.matmul %14, %15, %cst_14 {dimension_numbers = #tpu.dot_dimension_numbers<[1], [0], [0], [1], [0, 0, 1, 1], [], []>} : vector<32x128xf32>, vector<128x128xf32>, vector<32x128xf32> -> vector<32x128xf32>
    %c0_15 = arith.constant 0 : index
    %c0_16 = arith.constant 0 : index
    %17 = vector.load %arg7[%c0_15, %c0_16] : memref<1x128xf32, #tpu.memory_space<vmem>>, vector<1x128xf32>
    %18 = vector.broadcast %17 : vector<1x128xf32> to vector<32x128xf32>
    %19 = arith.addf %16, %18 : vector<32x128xf32>
    %c0_17 = arith.constant 0 : index
    %c0_18 = arith.constant 0 : index
    %20 = vector.load %arg8[%c0_17, %c0_18] : memref<32x128xf32, #tpu.memory_space<vmem>>, vector<32x128xf32>
    tpu.vector_store %arg8[%c0_17, %c0_18], %19 {strides = array<i32>} : memref<32x128xf32, #tpu.memory_space<vmem>>, vector<32x128xf32>,
    return
  }
  func.func @transform_0(%arg0: i32) -> (i32, i32) {
    %c0_i32 = arith.constant 0 : i32
    %c0_i32_0 = arith.constant 0 : i32
    return %arg0, %c0_i32 : i32, i32
  }
  func.func @transform_1(%arg0: i32) -> (i32, i32) {
    %c0_i32 = arith.constant 0 : i32
    %c0_i32_0 = arith.constant 0 : i32
    %c0_i32_1 = arith.constant 0 : i32
    return %c0_i32, %c0_i32_0 : i32, i32
  }
  func.func @transform_2(%arg0: i32) -> (i32, i32) {
    %c0_i32 = arith.constant 0 : i32
    %c0_i32_0 = arith.constant 0 : i32
    %c0_i32_1 = arith.constant 0 : i32
    return %c0_i32, %c0_i32_0 : i32, i32
  }
  func.func @transform_3(%arg0: i32) -> (i32, i32) {
    %c0_i32 = arith.constant 0 : i32
    %c0_i32_0 = arith.constant 0 : i32
    %c0_i32_1 = arith.constant 0 : i32
    return %c0_i32, %c0_i32_0 : i32, i32
  }
  func.func @transform_4(%arg0: i32) -> (i32, i32) {
    %c0_i32 = arith.constant 0 : i32
    %c0_i32_0 = arith.constant 0 : i32
    %c0_i32_1 = arith.constant 0 : i32
    return %c0_i32, %c0_i32_0 : i32, i32
  }
  func.func @transform_5(%arg0: i32) -> (i32, i32) {
    %c0_i32 = arith.constant 0 : i32
    %c0_i32_0 = arith.constant 0 : i32
    %c0_i32_1 = arith.constant 0 : i32
    return %c0_i32, %c0_i32_0 : i32, i32
  }
  func.func @transform_6(%arg0: i32) -> (i32, i32) {
    %c0_i32 = arith.constant 0 : i32
    %c0_i32_0 = arith.constant 0 : i32
    %c0_i32_1 = arith.constant 0 : i32
    return %c0_i32, %c0_i32_0 : i32, i32
  }
  func.func @transform_7(%arg0: i32) -> (i32, i32) {
    %c0_i32 = arith.constant 0 : i32
    %c0_i32_0 = arith.constant 0 : i32
    return %arg0, %c0_i32 : i32, i32
  }
}

</mosaic_0001>

<llo_original>
// kernel: tpu_custom_call.1
$region0: #{tpu_custom_call.1}
  #allocation0 [shape = 'u32[]', space=smem, size = 0x4, offset = 0x4, fixed_abs, tag = 'smem constant byte address 0x4 - core index']
  #allocation1 [shape = 'u32[144,128]{1,0:T(1,128)}', space=vmem, size = 0x12000, scoped, tag = 'internal scratch']
  %s0 = inlined_call_operand.vmem [shape: f32[50,32], index: 0, kind: input, shape index: {}]
  %s1 = inlined_call_operand.vmem [shape: f32[32,128], index: 1, kind: input, shape index: {}]
  %s2 = inlined_call_operand.vmem [shape: f32[1,128], index: 2, kind: input, shape index: {}]
  %s3 = inlined_call_operand.hbm [shape: f32[128,128], index: 3, kind: input, shape index: {}]
  %s4 = inlined_call_operand.vmem [shape: f32[1,128], index: 4, kind: input, shape index: {}]
  %s5 = inlined_call_operand.hbm [shape: f32[128,128], index: 5, kind: input, shape index: {}]
  %s6 = inlined_call_operand.vmem [shape: f32[1,128], index: 6, kind: input, shape index: {}]
  %s7 = inlined_call_operand.hbm [shape: f32[50,128], index: 7, kind: output, shape index: {}]
  %s8 = sld [smem:[#allocation0]]
  $region69: #{tpu_custom_call.1} parent=0
    _
  %s10 = ssub.s32 1, %s8
  %s11 = scalar_select 0, %s10, %s8
  $region1: #{tpu_custom_call.1} parent=0
    #allocation2 [shape = 'u8[65536]{0}', space=vmem, size = 0x10000, scoped, tag = 'input window, operand 3, single buffered']
    #allocation3 [shape = 's32[2]{0}', space=sflag, size = 0x8, scoped, tag = 'scoped memory for tpu_custom_call.1']
    #allocation4 [shape = 's32[2]{0}', space=sflag, size = 0x8, scoped, tag = 'scoped memory for tpu_custom_call.1']
    #allocation5 [shape = 'u8[65536]{0}', space=vmem, size = 0x10000, scoped, tag = 'input window, operand 5, single buffered']
    #allocation6 [shape = 's32[1]{0}', space=sflag, size = 0x4, scoped, tag = 'scoped memory for tpu_custom_call.1']
    #allocation7 [shape = 'u8[32768]{0}', space=vmem, size = 0x8000, scoped, tag = 'output window, operand 0']
    %12 = vsyncpa [#allocation3], 0
    %13 = vsyncpa [#allocation6], 0
    %14 = vsyncpa [#allocation4], 0
    %s15 = scalar_lea.sflag [#allocation4], 1
    %16 = vsyncpa %s15, 0
    loop: start=0, step=1, limit=4
    $region2: #{tpu_custom_call.1} parent=1 // loop_pre_header
      _
    $region3: #{tpu_custom_call.1} parent=1 // loop_header
      %s18 = sphi 0, %s22
      %p19 = scmp.ge.s32.totalorder %s18, 4
      %s28 = sphi 0, %s30
      %s31 = sphi 0, %s28
      %s32 = sphi 0, %s31
      %s48 = sphi 0, %s32
      %s52 = sphi 0, %s52
      %s54 = sphi 0, %s52
      %s55 = sphi 0, %s54
      %s69 = sphi 0, %s55
      %s73 = sphi 0, %s73
      %s75 = sphi 0, %s73
      %s76 = sphi 0, %s75
      %s90 = sphi 0, %s76
      %s94 = sphi 0, %s94
      %s96 = sphi 0, %s94
      %s97 = sphi 0, %s96
      %s111 = sphi 0, %s97
      %s115 = sphi 0, %s115
      %s117 = sphi 0, %s115
      %s118 = sphi 0, %s117
      %s132 = sphi 0, %s118
      %s136 = sphi 0, %s136
      %s138 = sphi 0, %s136
      %s139 = sphi 0, %s138
      %s153 = sphi 0, %s139
      %s157 = sphi 0, %s157
      %s159 = sphi 0, %s157
      %s160 = sphi 0, %s159
      %s174 = sphi 0, %s160
      %s180 = sphi 0, %s182
      %s183 = sphi 0, %s180
      %s184 = sphi 0, %s183
      %s200 = sphi 0, %s184
    $region4: #{tpu_custom_call.1} parent=1 // loop_header_branch
      %21 = sbr.rel (%p19) target = $region8
    $region5: #{tpu_custom_call.1} parent=1 // loop_body
      %s23 = ssub.s32 %s18, 1
      %s24 = ssub.s32 %s18, 2
      %s25 = sadd.s32 %s18, 1
      %s26 = ssub.s32 %s18, %s25
      %p27 = scmp.eq.s32.totalorder %s26, 0
      %s29 = sadd.s32 %s28, 1
      %s30 = scalar_select %p27, %s28, %s29
      %p33 = pneg %p27
      %p34 = scmp.eq.s32.totalorder %s18, 1
      %p35 = por %p33, %p34
      %p36 = scmp.ne.s32.totalorder %s28, %s31
      %p37 = scmp.eq.s32.totalorder %s18, 0
      %p38 = por %p36, %p37
      %p39 = scmp.ne.s32.totalorder %s28, %s31
      %p40 = scmp.eq.s32.totalorder %s23, 1
      %p41 = por %p39, %p40
      %p42 = scmp.ne.s32.totalorder %s31, %s32
      %p43 = scmp.eq.s32.totalorder %s23, 0
      %p44 = por %p42, %p43
      %p45 = scmp.ne.s32.totalorder %s31, %s32
      %p46 = scmp.eq.s32.totalorder %s24, 1
      %p47 = por %p45, %p46
      %p49 = scmp.ne.s32.totalorder %s32, %s48
      %p50 = scmp.eq.s32.totalorder %s24, 0
      %p51 = por %p49, %p50
      %s53 = sadd.s32 %s52, 1
      %p56 = scmp.eq.s32.totalorder %s18, 1
      %p57 = scmp.ne.s32.totalorder %s52, %s54
      %p58 = scmp.eq.s32.totalorder %s18, 0
      %p59 = por %p57, %p58
      %p60 = scmp.ne.s32.totalorder %s52, %s54
      %p61 = scmp.eq.s32.totalorder %s23, 1
      %p62 = por %p60, %p61
      %p63 = scmp.ne.s32.totalorder %s54, %s55
      %p64 = scmp.eq.s32.totalorder %s23, 0
      %p65 = por %p63, %p64
      %p66 = scmp.ne.s32.totalorder %s54, %s55
      %p67 = scmp.eq.s32.totalorder %s24, 1
      %p68 = por %p66, %p67
      %p70 = scmp.ne.s32.totalorder %s55, %s69
      %p71 = scmp.eq.s32.totalorder %s24, 0
      %p72 = por %p70, %p71
      %s74 = sadd.s32 %s73, 1
      %p77 = scmp.eq.s32.totalorder %s18, 1
      %p78 = scmp.ne.s32.totalorder %s73, %s75
      %p79 = scmp.eq.s32.totalorder %s18, 0
      %p80 = por %p78, %p79
      %p81 = scmp.ne.s32.totalorder %s73, %s75
      %p82 = scmp.eq.s32.totalorder %s23, 1
      %p83 = por %p81, %p82
      %p84 = scmp.ne.s32.totalorder %s75, %s76
      %p85 = scmp.eq.s32.totalorder %s23, 0
      %p86 = por %p84, %p85
      %p87 = scmp.ne.s32.totalorder %s75, %s76
      %p88 = scmp.eq.s32.totalorder %s24, 1
      %p89 = por %p87, %p88
      %p91 = scmp.ne.s32.totalorder %s76, %s90
      %p92 = scmp.eq.s32.totalorder %s24, 0
      %p93 = por %p91, %p92
      %s95 = sadd.s32 %s94, 1
      %p98 = scmp.eq.s32.totalorder %s18, 1
      %p99 = scmp.ne.s32.totalorder %s94, %s96
      %p100 = scmp.eq.s32.totalorder %s18, 0
      %p101 = por %p99, %p100
      %p102 = scmp.ne.s32.totalorder %s94, %s96
      %p103 = scmp.eq.s32.totalorder %s23, 1
      %p104 = por %p102, %p103
      %p105 = scmp.ne.s32.totalorder %s96, %s97
      %p106 = scmp.eq.s32.totalorder %s23, 0
      %p107 = por %p105, %p106
      %p108 = scmp.ne.s32.totalorder %s96, %s97
      %p109 = scmp.eq.s32.totalorder %s24, 1
      %p110 = por %p108, %p109
      %p112 = scmp.ne.s32.totalorder %s97, %s111
      %p113 = scmp.eq.s32.totalorder %s24, 0
      %p114 = por %p112, %p113
      %s116 = sadd.s32 %s115, 1
      %p119 = scmp.eq.s32.totalorder %s18, 1
      %p120 = scmp.ne.s32.totalorder %s115, %s117
      %p121 = scmp.eq.s32.totalorder %s18, 0
      %p122 = por %p120, %p121
      %p123 = scmp.ne.s32.totalorder %s115, %s117
      %p124 = scmp.eq.s32.totalorder %s23, 1
      %p125 = por %p123, %p124
      %p126 = scmp.ne.s32.totalorder %s117, %s118
      %p127 = scmp.eq.s32.totalorder %s23, 0
      %p128 = por %p126, %p127
      %p129 = scmp.ne.s32.totalorder %s117, %s118
      %p130 = scmp.eq.s32.totalorder %s24, 1
      %p131 = por %p129, %p130
      %p133 = scmp.ne.s32.totalorder %s118, %s132
      %p134 = scmp.eq.s32.totalorder %s24, 0
      %p135 = por %p133, %p134
      %s137 = sadd.s32 %s136, 1
      %p140 = scmp.eq.s32.totalorder %s18, 1
      %p141 = scmp.ne.s32.totalorder %s136, %s138
      %p142 = scmp.eq.s32.totalorder %s18, 0
      %p143 = por %p141, %p142
      %p144 = scmp.ne.s32.totalorder %s136, %s138
      %p145 = scmp.eq.s32.totalorder %s23, 1
      %p146 = por %p144, %p145
      %p147 = scmp.ne.s32.totalorder %s138, %s139
      %p148 = scmp.eq.s32.totalorder %s23, 0
      %p149 = por %p147, %p148
      %p150 = scmp.ne.s32.totalorder %s138, %s139
      %p151 = scmp.eq.s32.totalorder %s24, 1
      %p152 = por %p150, %p151
      %p154 = scmp.ne.s32.totalorder %s139, %s153
      %p155 = scmp.eq.s32.totalorder %s24, 0
      %p156 = por %p154, %p155
      %s158 = sadd.s32 %s157, 1
      %p161 = scmp.eq.s32.totalorder %s18, 1
      %p162 = scmp.ne.s32.totalorder %s157, %s159
      %p163 = scmp.eq.s32.totalorder %s18, 0
      %p164 = por %p162, %p163
      %p165 = scmp.ne.s32.totalorder %s157, %s159
      %p166 = scmp.eq.s32.totalorder %s23, 1
      %p167 = por %p165, %p166
      %p168 = scmp.ne.s32.totalorder %s159, %s160
      %p169 = scmp.eq.s32.totalorder %s23, 0
      %p170 = por %p168, %p169
      %p171 = scmp.ne.s32.totalorder %s159, %s160
      %p172 = scmp.eq.s32.totalorder %s24, 1
      %p173 = por %p171, %p172
      %p175 = scmp.ne.s32.totalorder %s160, %s174
      %p176 = scmp.eq.s32.totalorder %s24, 0
      %p177 = por %p175, %p176
      %s178 = ssub.s32 %s18, %s25
      %p179 = scmp.eq.s32.totalorder %s178, 0
      %s181 = sadd.s32 %s180, 1
      %s182 = scalar_select %p179, %s180, %s181
      %p185 = pneg %p179
      %p186 = scmp.eq.s32.totalorder %s18, 1
      %p187 = por %p185, %p186
      %p188 = scmp.ne.s32.totalorder %s180, %s183
      %p189 = scmp.eq.s32.totalorder %s18, 0
      %p190 = por %p188, %p189
      %p191 = scmp.ne.s32.totalorder %s180, %s183
      %p192 = scmp.eq.s32.totalorder %s23, 1
      %p193 = por %p191, %p192
      %p194 = scmp.ne.s32.totalorder %s183, %s184
      %p195 = scmp.eq.s32.totalorder %s23, 0
      %p196 = por %p194, %p195
      %p197 = scmp.ne.s32.totalorder %s183, %s184
      %p198 = scmp.eq.s32.totalorder %s24, 1
      %p199 = por %p197, %p198
      %p201 = scmp.ne.s32.totalorder %s184, %s200
      %p202 = scmp.eq.s32.totalorder %s24, 0
      %p203 = por %p201, %p202
      %p204 = scmp.le.s32.totalorder 1, %s18
      %p205 = scmp.lt.s32.totalorder %s18, 3
      %p206 = pnand %p204, %p205
      %p207 = pneg %p206
      // Predicated region
      $region9: #{tpu_custom_call.1} parent=5 // pred_check
        _
      $region10: #{tpu_custom_call.1} parent=5 // pred_check_branch
        %209 = sbr.rel (%p206) target = $region12
      $region11: #{tpu_custom_call.1} parent=5 // pred_region
        %s210 = ssub.s32 %s18, 1
        // Predicated region
        $region13: #{tpu_custom_call.1} parent=11 // pred_check
          %p211 = pneg %p65
        $region14: #{tpu_custom_call.1} parent=11 // pred_check_branch
          %213 = sbr.rel (%p211) target = $region16
        $region15: #{tpu_custom_call.1} parent=11 // pred_region
          _
        $region16: #{tpu_custom_call.1} parent=11 // pred_fallthru
          _
        // Predicated region
        $region17: #{tpu_custom_call.1} parent=11 // pred_check
          %p214 = pneg %p86
        $region18: #{tpu_custom_call.1} parent=11 // pred_check_branch
          %216 = sbr.rel (%p214) target = $region20
        $region19: #{tpu_custom_call.1} parent=11 // pred_region
          _
        $region20: #{tpu_custom_call.1} parent=11 // pred_fallthru
          _
        // Predicated region
        $region21: #{tpu_custom_call.1} parent=11 // pred_check
          %p217 = pneg %p107
        $region22: #{tpu_custom_call.1} parent=11 // pred_check_branch
          %219 = sbr.rel (%p217) target = $region24
        $region23: #{tpu_custom_call.1} parent=11 // pred_region
          %s221 = ssub.s32 2048, 2048
          %222 = vsyncadd [#allocation3], %s221
          %s223 = sshll.u32 [#allocation2], 4
          %s224 = int_to_ptr.vmem [resolvable:$true] %s223
          %229 = dma.hbm_to_vmem [thread:$0]  %s3, 2048, %s224, [#allocation3], 128, 128, 8
        $region24: #{tpu_custom_call.1} parent=11 // pred_fallthru
          _
        // Predicated region
        $region25: #{tpu_custom_call.1} parent=11 // pred_check
          %p230 = pneg %p128
        $region26: #{tpu_custom_call.1} parent=11 // pred_check_branch
          %232 = sbr.rel (%p230) target = $region28
        $region27: #{tpu_custom_call.1} parent=11 // pred_region
          _
        $region28: #{tpu_custom_call.1} parent=11 // pred_fallthru
          _
        // Predicated region
        $region29: #{tpu_custom_call.1} parent=11 // pred_check
          %p233 = pneg %p149
        $region30: #{tpu_custom_call.1} parent=11 // pred_check_branch
          %235 = sbr.rel (%p233) target = $region32
        $region31: #{tpu_custom_call.1} parent=11 // pred_region
          %s237 = ssub.s32 2048, 2048
          %238 = vsyncadd [#allocation6], %s237
          %s239 = sshll.u32 [#allocation5], 4
          %s240 = int_to_ptr.vmem [resolvable:$true] %s239
          %245 = dma.hbm_to_vmem [thread:$0]  %s5, 2048, %s240, [#allocation6], 128, 128, 8
        $region32: #{tpu_custom_call.1} parent=11 // pred_fallthru
          _
        // Predicated region
        $region33: #{tpu_custom_call.1} parent=11 // pred_check
          %p246 = pneg %p170
        $region34: #{tpu_custom_call.1} parent=11 // pred_check_branch
          %248 = sbr.rel (%p246) target = $region36
        $region35: #{tpu_custom_call.1} parent=11 // pred_region
          _
        $region36: #{tpu_custom_call.1} parent=11 // pred_fallthru
          _
      $region12: #{tpu_custom_call.1} parent=5 // pred_fallthru
        _
      %p249 = scmp.lt.s32.totalorder %s18, 2
      // Predicated region
      $region37: #{tpu_custom_call.1} parent=5 // pred_check
        %p250 = pneg %p249
      $region38: #{tpu_custom_call.1} parent=5 // pred_check_branch
        %252 = sbr.rel (%p250) target = $region40
      $region39: #{tpu_custom_call.1} parent=5 // pred_region
        // Predicated region
        $region41: #{tpu_custom_call.1} parent=39 // pred_check
          %p253 = pneg %p38
        $region42: #{tpu_custom_call.1} parent=39 // pred_check_branch
          %255 = sbr.rel (%p253) target = $region44
        $region43: #{tpu_custom_call.1} parent=39 // pred_region
          %s256 = smul.u32 4, %s18
          %s257 = ssub.s32 7, %s256
          %p258 = scmp.lt.s32.totalorder %s257, 4
          %s259 = scalar_select %p258, %s257, 4
          %s260 = smul.u32 128, %s259
          %p261 = scmp.lt.s32.totalorder %s256, 6
          %s262 = scalar_select %p261, %s256, 6
          %s263 = smul.addr %s262, 8
          %s264 = scalar_lea.vmem %s0, %s263
          %s265 = smul.u32 4, %s18
          %s266 = ssub.s32 7, %s265
          %p267 = scmp.lt.s32.totalorder %s266, 4
          %s268 = scalar_select %p267, %s266, 4
          %s269 = smul.u32 128, %s268
        $region44: #{tpu_custom_call.1} parent=39 // pred_fallthru
          _
      $region40: #{tpu_custom_call.1} parent=5 // pred_fallthru
        _
      %p270 = scmp.le.s32.totalorder 1, %s18
      %p271 = scmp.lt.s32.totalorder %s18, 3
      %p272 = pnand %p270, %p271
      %p273 = pneg %p272
      // Predicated region
      $region45: #{tpu_custom_call.1} parent=5 // pred_check
        _
      $region46: #{tpu_custom_call.1} parent=5 // pred_check_branch
        %275 = sbr.rel (%p272) target = $region48
      $region47: #{tpu_custom_call.1} parent=5 // pred_region
        %s276 = ssub.s32 %s18, 1
        // Predicated region
        $region49: #{tpu_custom_call.1} parent=47 // pred_check
          %p277 = pneg %p107
        $region50: #{tpu_custom_call.1} parent=47 // pred_check_branch
          %279 = sbr.rel (%p277) target = $region52
        $region51: #{tpu_custom_call.1} parent=47 // pred_region
          %280 = dma.done [#allocation3], 2048
        $region52: #{tpu_custom_call.1} parent=47 // pred_fallthru
          _
        // Predicated region
        $region53: #{tpu_custom_call.1} parent=47 // pred_check
          %p281 = pneg %p149
        $region54: #{tpu_custom_call.1} parent=47 // pred_check_branch
          %283 = sbr.rel (%p281) target = $region56
        $region55: #{tpu_custom_call.1} parent=47 // pred_region
          %284 = dma.done [#allocation6], 2048
        $region56: #{tpu_custom_call.1} parent=47 // pred_fallthru
          _
        %s285 = smul.u32 4, %s23
        %s286 = ssub.s32 7, %s285
        %p287 = scmp.lt.s32.totalorder %s286, 4
        %s288 = scalar_select %p287, %s286, 4
        %s289 = smul.u32 128, %s288
        %p290 = scmp.lt.s32.totalorder %s285, 6
        %s291 = scalar_select %p290, %s285, 6
        %s292 = smul.addr %s291, 8
        %s293 = scalar_lea.vmem %s0, %s292
        %p294 = pneg %p44
        %p295 = pneg %p41
        %p296 = pneg %p65
        %p297 = pneg %p62
        %p298 = pneg %p86
        %p299 = pneg %p83
        %p300 = pneg %p107
        %p301 = pneg %p104
        %p302 = pneg %p128
        %p303 = pneg %p125
        %p304 = pneg %p149
        %p305 = pneg %p146
        %p306 = pneg %p170
        %p307 = pneg %p167
        %p308 = pneg %p196
        %p309 = pneg %p193
        %s310 = sand.u32 %s183, 1
        %s311 = scalar_lea.sflag [#allocation4], %s310
        %s312 = sand.u32 %s183, 1
        %s313 = smul.addr %s312, 32
        %s314 = scalar_lea.vmem [#allocation7], %s313
        %s315 = smul.u32 4, %s23
        %s316 = ssub.s32 7, %s315
        %p317 = scmp.lt.s32.totalorder %s316, 4
        %s318 = scalar_select %p317, %s316, 4
        %s319 = smul.u32 128, %s318
        %p320 = scmp.lt.s32.totalorder %s315, 6
        %s321 = scalar_select %p320, %s315, 6
        %s322 = smul.addr %s321, 8
        %s323 = scalar_lea.vmem %s0, %s322
        %s324 = smul.u32 4, %s23
        %s325 = ssub.s32 7, %s324
        %p326 = scmp.lt.s32.totalorder %s325, 4
        %s327 = scalar_select %p326, %s325, 4
        %s328 = smul.u32 128, %s327
        %s329 = smul.u32 4, %s23
        %s330 = ssub.s32 7, %s329
        %p331 = scmp.lt.s32.totalorder %s330, 4
        %s332 = scalar_select %p331, %s330, 4
        %s333 = smul.u32 128, %s332
        %v334 = vld [vmem:[%s323] sm:$0xff]
        %v335 = vld [vmem:[%s323 + $0x8] sm:$0xff]
        %v336 = vld [vmem:[%s323 + $0x10] sm:$0xff]
        %v337 = vld [vmem:[%s323 + $0x18] sm:$0xff]
        %v338 = vld [vmem:[%s1] sm:$0xff]
        %v339 = vld [vmem:[%s1 + $0x8] sm:$0xff]
        %v340 = vld [vmem:[%s1 + $0x10] sm:$0xff]
        %v341 = vld [vmem:[%s1 + $0x18] sm:$0xff]
        %v342 = vld [vmem:[%s2] sm:$0x1]
        %v344 = vlaneseq
        %v345 = vshrl.u32 %v344, 7
        %v346 = vsub.s32 0, %v345
        %v347 = vrot.slane %v342, %v346
        %vm349 = vcmask 261120
        %v351 = vsel %vm349, %v334, 0
        %v354 = vsel %vm349, %v335, 0
        %v357 = vsel %vm349, %v336, 0
        %v360 = vsel %vm349, %v337, 0
        %362 = vmatprep.subr.mxu0 0.0
        %363 = vmatpush1.msra.mxu0 %v338
        %364 = vmatprep.subr.mxu0 0.0
        %365 = vmatpush1.msra.mxu0 %v339
        %366 = vmatprep.subr.mxu0 0.0
        %367 = vmatpush1.msra.mxu0 %v340
        %368 = vmatprep.subr.mxu0 0.0
        %369 = vmatpush1.msra.mxu0 %v341
        %370 = vmatprep.subr.mxu0 0.0
        %371 = vmatpush1.msra.mxu0 0.0
        %372 = vmatprep.subr.mxu0 0.0
        %373 = vmatpush1.msra.mxu0 0.0
        %374 = vmatprep.subr.mxu0 0.0
        %375 = vmatpush1.msra.mxu0 0.0
        %376 = vmatprep.subr.mxu0 0.0
        %377 = vmatpush1.msra.mxu0 0.0
        %378 = vmatprep.subr.mxu0 0.0
        %379 = vmatpush1.msra.mxu0 0.0
        %380 = vmatprep.subr.mxu0 0.0
        %381 = vmatpush1.msra.mxu0 0.0
        %382 = vmatprep.subr.mxu0 0.0
        %383 = vmatpush1.msra.mxu0 0.0
        %384 = vmatprep.subr.mxu0 0.0
        %385 = vmatpush1.msra.mxu0 0.0
        %386 = vmatprep.subr.mxu0 0.0
        %387 = vmatpush1.msra.mxu0 0.0
        %388 = vmatprep.subr.mxu0 0.0
        %389 = vmatpush1.msra.mxu0 0.0
        %390 = vmatprep.subr.mxu0 0.0
        %391 = vmatpush1.msra.mxu0 0.0
        %392 = vmatprep.subr.mxu0 0.0
        %393 = vmatpush1.msra.mxu0 0.0
        %394 = vmatprep.subr.mxu0 0.0
        %395 = vmatpush1.msra.mxu0 0.0
        %396 = vmatprep.subr.mxu0 0.0
        %397 = vmatpush1.msra.mxu0 0.0
        %398 = vmatprep.subr.mxu0 0.0
        %399 = vmatpush1.msra.mxu0 0.0
        %400 = vmatprep.subr.mxu0 0.0
        %401 = vmatpush1.msra.mxu0 0.0
        %402 = vmatprep.subr.mxu0 0.0
        %403 = vmatpush1.msra.mxu0 0.0
        %404 = vmatprep.subr.mxu0 0.0
        %405 = vmatpush1.msra.mxu0 0.0
        %406 = vmatprep.subr.mxu0 0.0
        %407 = vmatpush1.msra.mxu0 0.0
        %408 = vmatprep.subr.mxu0 0.0
        %409 = vmatpush1.msra.mxu0 0.0
        %410 = vmatprep.subr.mxu0 0.0
        %411 = vmatpush1.msra.mxu0 0.0
        %412 = vmatprep.subr.mxu0 0.0
        %413 = vmatpush1.msra.mxu0 0.0
        %414 = vmatprep.subr.mxu0 0.0
        %415 = vmatpush1.msra.mxu0 0.0
        %416 = vmatprep.subr.mxu0 0.0
        %417 = vmatpush1.msra.mxu0 0.0
        %418 = vmatprep.subr.mxu0 0.0
        %419 = vmatpush1.msra.mxu0 0.0
        %420 = vmatprep.subr.mxu0 0.0
        %421 = vmatpush1.msra.mxu0 0.0
        %422 = vmatprep.subr.mxu0 0.0
        %423 = vmatpush1.msra.mxu0 0.0
        %424 = vmatprep.subr.mxu0 0.0
        %425 = vmatpush1.msra.mxu0 0.0
        %426 = vmatprep.mubr.f32.mxu0 0.0
        %427 = vmatmul.mubr.f32.gmra.mrb[0].mxu0 %v351
        %v428 = vpop.f32.mrb[0].mxu0
        %v429 = vadd.f32 %v347, %v428
        %v430 = vpop.f32.mrb[0].mxu0
        %431 = vmatprep.mubr.f32.mxu0 0.0
        %432 = vmatmul.mubr.f32.gmra.mrb[0].mxu0 %v354
        %v433 = vpop.f32.mrb[0].mxu0
        %v434 = vadd.f32 %v347, %v433
        %v435 = vpop.f32.mrb[0].mxu0
        %436 = vmatprep.mubr.f32.mxu0 0.0
        %437 = vmatmul.mubr.f32.gmra.mrb[0].mxu0 %v357
        %v438 = vpop.f32.mrb[0].mxu0
        %v439 = vadd.f32 %v347, %v438
        %v440 = vpop.f32.mrb[0].mxu0
        %441 = vmatprep.mubr.f32.mxu0 0.0
        %442 = vmatmul.mubr.f32.gmra.mrb[0].mxu0 %v360
        %v443 = vpop.f32.mrb[0].mxu0
        %v444 = vadd.f32 %v347, %v443
        %v445 = vpop.f32.mrb[0].mxu0
        %446 = vdwg.mxu0
        %v447 = vmax.f32 %v429, 0.0
        %v448 = vmax.f32 %v434, 0.0
        %v449 = vmax.f32 %v439, 0.0
        %v450 = vmax.f32 %v444, 0.0
        %v451 = vld [vmem:[#allocation2] sm:$0xff]
        %v452 = vld [vmem:[#allocation2 + $0x8] sm:$0xff]
        %v453 = vld [vmem:[#allocation2 + $0x10] sm:$0xff]
        %v454 = vld [vmem:[#allocation2 + $0x18] sm:$0xff]
        %v455 = vld [vmem:[#allocation2 + $0x20] sm:$0xff]
        %v456 = vld [vmem:[#allocation2 + $0x28] sm:$0xff]
        %v457 = vld [vmem:[#allocation2 + $0x30] sm:$0xff]
        %v458 = vld [vmem:[#allocation2 + $0x38] sm:$0xff]
        %v459 = vld [vmem:[#allocation2 + $0x40] sm:$0xff]
        %v460 = vld [vmem:[#allocation2 + $0x48] sm:$0xff]
        %v461 = vld [vmem:[#allocation2 + $0x50] sm:$0xff]
        %v462 = vld [vmem:[#allocation2 + $0x58] sm:$0xff]
        %v463 = vld [vmem:[#allocation2 + $0x60] sm:$0xff]
        %v464 = vld [vmem:[#allocation2 + $0x68] sm:$0xff]
        %v465 = vld [vmem:[#allocation2 + $0x70] sm:$0xff]
        %v466 = vld [vmem:[#allocation2 + $0x78] sm:$0xff]
        %v467 = vld [vmem:[%s4] sm:$0x1]
        %v469 = vlaneseq
        %v470 = vshrl.u32 %v469, 7
        %v471 = vsub.s32 0, %v470
        %v472 = vrot.slane %v467, %v471
        %474 = vmatprep.subr.mxu0 0.0
        %475 = vmatpush1.msra.mxu0 %v451
        %476 = vmatprep.subr.mxu0 0.0
        %477 = vmatpush1.msra.mxu0 %v452
        %478 = vmatprep.subr.mxu0 0.0
        %479 = vmatpush1.msra.mxu0 %v453
        %480 = vmatprep.subr.mxu0 0.0
        %481 = vmatpush1.msra.mxu0 %v454
        %482 = vmatprep.subr.mxu0 0.0
        %483 = vmatpush1.msra.mxu0 %v455
        %484 = vmatprep.subr.mxu0 0.0
        %485 = vmatpush1.msra.mxu0 %v456
        %486 = vmatprep.subr.mxu0 0.0
        %487 = vmatpush1.msra.mxu0 %v457
        %488 = vmatprep.subr.mxu0 0.0
        %489 = vmatpush1.msra.mxu0 %v458
        %490 = vmatprep.subr.mxu0 0.0
        %491 = vmatpush1.msra.mxu0 %v459
        %492 = vmatprep.subr.mxu0 0.0
        %493 = vmatpush1.msra.mxu0 %v460
        %494 = vmatprep.subr.mxu0 0.0
        %495 = vmatpush1.msra.mxu0 %v461
        %496 = vmatprep.subr.mxu0 0.0
        %497 = vmatpush1.msra.mxu0 %v462
        %498 = vmatprep.subr.mxu0 0.0
        %499 = vmatpush1.msra.mxu0 %v463
        %500 = vmatprep.subr.mxu0 0.0
        %501 = vmatpush1.msra.mxu0 %v464
        %502 = vmatprep.subr.mxu0 0.0
        %503 = vmatpush1.msra.mxu0 %v465
        %504 = vmatprep.subr.mxu0 0.0
        %505 = vmatpush1.msra.mxu0 %v466
        %506 = vmatprep.subr.mxu0 0.0
        %507 = vmatpush1.msra.mxu0 0.0
        %508 = vmatprep.subr.mxu0 0.0
        %509 = vmatpush1.msra.mxu0 0.0
        %510 = vmatprep.subr.mxu0 0.0
        %511 = vmatpush1.msra.mxu0 0.0
        %512 = vmatprep.subr.mxu0 0.0
        %513 = vmatpush1.msra.mxu0 0.0
        %514 = vmatprep.subr.mxu0 0.0
        %515 = vmatpush1.msra.mxu0 0.0
        %516 = vmatprep.subr.mxu0 0.0
        %517 = vmatpush1.msra.mxu0 0.0
        %518 = vmatprep.subr.mxu0 0.0
        %519 = vmatpush1.msra.mxu0 0.0
        %520 = vmatprep.subr.mxu0 0.0
        %521 = vmatpush1.msra.mxu0 0.0
        %522 = vmatprep.subr.mxu0 0.0
        %523 = vmatpush1.msra.mxu0 0.0
        %524 = vmatprep.subr.mxu0 0.0
        %525 = vmatpush1.msra.mxu0 0.0
        %526 = vmatprep.subr.mxu0 0.0
        %527 = vmatpush1.msra.mxu0 0.0
        %528 = vmatprep.subr.mxu0 0.0
        %529 = vmatpush1.msra.mxu0 0.0
        %530 = vmatprep.subr.mxu0 0.0
        %531 = vmatpush1.msra.mxu0 0.0
        %532 = vmatprep.subr.mxu0 0.0
        %533 = vmatpush1.msra.mxu0 0.0
        %534 = vmatprep.subr.mxu0 0.0
        %535 = vmatpush1.msra.mxu0 0.0
        %536 = vmatprep.subr.mxu0 0.0
        %537 = vmatpush1.msra.mxu0 0.0
        %538 = vmatprep.mubr.f32.mxu0 0.0
        %539 = vmatmul.mubr.f32.gmra.mrb[0].mxu0 %v447
        %v540 = vpop.f32.mrb[0].mxu0
        %v541 = vadd.f32 %v472, %v540
        %v542 = vpop.f32.mrb[0].mxu0
        %543 = vmatprep.mubr.f32.mxu0 0.0
        %544 = vmatmul.mubr.f32.gmra.mrb[0].mxu0 %v448
        %v545 = vpop.f32.mrb[0].mxu0
        %v546 = vadd.f32 %v472, %v545
        %v547 = vpop.f32.mrb[0].mxu0
        %548 = vmatprep.mubr.f32.mxu0 0.0
        %549 = vmatmul.mubr.f32.gmra.mrb[0].mxu0 %v449
        %v550 = vpop.f32.mrb[0].mxu0
        %v551 = vadd.f32 %v472, %v550
        %v552 = vpop.f32.mrb[0].mxu0
        %553 = vmatprep.mubr.f32.mxu0 0.0
        %554 = vmatmul.mubr.f32.gmra.mrb[0].mxu0 %v450
        %v555 = vpop.f32.mrb[0].mxu0
        %v556 = vadd.f32 %v472, %v555
        %v557 = vpop.f32.mrb[0].mxu0
        %558 = vdwg.mxu0
        %v559 = vmax.f32 %v541, 0.0
        %v560 = vmax.f32 %v546, 0.0
        %v561 = vmax.f32 %v551, 0.0
        %v562 = vmax.f32 %v556, 0.0
        %v563 = vld [vmem:[#allocation5] sm:$0xff]
        %v564 = vld [vmem:[#allocation5 + $0x8] sm:$0xff]
        %v565 = vld [vmem:[#allocation5 + $0x10] sm:$0xff]
        %v566 = vld [vmem:[#allocation5 + $0x18] sm:$0xff]
        %v567 = vld [vmem:[#allocation5 + $0x20] sm:$0xff]
        %v568 = vld [vmem:[#allocation5 + $0x28] sm:$0xff]
        %v569 = vld [vmem:[#allocation5 + $0x30] sm:$0xff]
        %v570 = vld [vmem:[#allocation5 + $0x38] sm:$0xff]
        %v571 = vld [vmem:[#allocation5 + $0x40] sm:$0xff]
        %v572 = vld [vmem:[#allocation5 + $0x48] sm:$0xff]
        %v573 = vld [vmem:[#allocation5 + $0x50] sm:$0xff]
        %v574 = vld [vmem:[#allocation5 + $0x58] sm:$0xff]
        %v575 = vld [vmem:[#allocation5 + $0x60] sm:$0xff]
        %v576 = vld [vmem:[#allocation5 + $0x68] sm:$0xff]
        %v577 = vld [vmem:[#allocation5 + $0x70] sm:$0xff]
        %v578 = vld [vmem:[#allocation5 + $0x78] sm:$0xff]
        %v579 = vld [vmem:[%s6] sm:$0x1]
        %v581 = vlaneseq
        %v582 = vshrl.u32 %v581, 7
        %v583 = vsub.s32 0, %v582
        %v584 = vrot.slane %v579, %v583
        %586 = vmatprep.subr.mxu0 0.0
        %587 = vmatpush1.msra.mxu0 %v563
        %588 = vmatprep.subr.mxu0 0.0
        %589 = vmatpush1.msra.mxu0 %v564
        %590 = vmatprep.subr.mxu0 0.0
        %591 = vmatpush1.msra.mxu0 %v565
        %592 = vmatprep.subr.mxu0 0.0
        %593 = vmatpush1.msra.mxu0 %v566
        %594 = vmatprep.subr.mxu0 0.0
        %595 = vmatpush1.msra.mxu0 %v567
        %596 = vmatprep.subr.mxu0 0.0
        %597 = vmatpush1.msra.mxu0 %v568
        %598 = vmatprep.subr.mxu0 0.0
        %599 = vmatpush1.msra.mxu0 %v569
        %600 = vmatprep.subr.mxu0 0.0
        %601 = vmatpush1.msra.mxu0 %v570
        %602 = vmatprep.subr.mxu0 0.0
        %603 = vmatpush1.msra.mxu0 %v571
        %604 = vmatprep.subr.mxu0 0.0
        %605 = vmatpush1.msra.mxu0 %v572
        %606 = vmatprep.subr.mxu0 0.0
        %607 = vmatpush1.msra.mxu0 %v573
        %608 = vmatprep.subr.mxu0 0.0
        %609 = vmatpush1.msra.mxu0 %v574
        %610 = vmatprep.subr.mxu0 0.0
        %611 = vmatpush1.msra.mxu0 %v575
        %612 = vmatprep.subr.mxu0 0.0
        %613 = vmatpush1.msra.mxu0 %v576
        %614 = vmatprep.subr.mxu0 0.0
        %615 = vmatpush1.msra.mxu0 %v577
        %616 = vmatprep.subr.mxu0 0.0
        %617 = vmatpush1.msra.mxu0 %v578
        %618 = vmatprep.subr.mxu0 0.0
        %619 = vmatpush1.msra.mxu0 0.0
        %620 = vmatprep.subr.mxu0 0.0
        %621 = vmatpush1.msra.mxu0 0.0
        %622 = vmatprep.subr.mxu0 0.0
        %623 = vmatpush1.msra.mxu0 0.0
        %624 = vmatprep.subr.mxu0 0.0
        %625 = vmatpush1.msra.mxu0 0.0
        %626 = vmatprep.subr.mxu0 0.0
        %627 = vmatpush1.msra.mxu0 0.0
        %628 = vmatprep.subr.mxu0 0.0
        %629 = vmatpush1.msra.mxu0 0.0
        %630 = vmatprep.subr.mxu0 0.0
        %631 = vmatpush1.msra.mxu0 0.0
        %632 = vmatprep.subr.mxu0 0.0
        %633 = vmatpush1.msra.mxu0 0.0
        %634 = vmatprep.subr.mxu0 0.0
        %635 = vmatpush1.msra.mxu0 0.0
        %636 = vmatprep.subr.mxu0 0.0
        %637 = vmatpush1.msra.mxu0 0.0
        %638 = vmatprep.subr.mxu0 0.0
        %639 = vmatpush1.msra.mxu0 0.0
        %640 = vmatprep.subr.mxu0 0.0
        %641 = vmatpush1.msra.mxu0 0.0
        %642 = vmatprep.subr.mxu0 0.0
        %643 = vmatpush1.msra.mxu0 0.0
        %644 = vmatprep.subr.mxu0 0.0
        %645 = vmatpush1.msra.mxu0 0.0
        %646 = vmatprep.subr.mxu0 0.0
        %647 = vmatpush1.msra.mxu0 0.0
        %648 = vmatprep.subr.mxu0 0.0
        %649 = vmatpush1.msra.mxu0 0.0
        %650 = vmatprep.mubr.f32.mxu0 0.0
        %651 = vmatmul.mubr.f32.gmra.mrb[0].mxu0 %v559
        %v652 = vpop.f32.mrb[0].mxu0
        %v653 = vadd.f32 %v584, %v652
        %v654 = vpop.f32.mrb[0].mxu0
        %655 = vmatprep.mubr.f32.mxu0 0.0
        %656 = vmatmul.mubr.f32.gmra.mrb[0].mxu0 %v560
        %v657 = vpop.f32.mrb[0].mxu0
        %v658 = vadd.f32 %v584, %v657
        %v659 = vpop.f32.mrb[0].mxu0
        %660 = vmatprep.mubr.f32.mxu0 0.0
        %661 = vmatmul.mubr.f32.gmra.mrb[0].mxu0 %v561
        %v662 = vpop.f32.mrb[0].mxu0
        %v663 = vadd.f32 %v584, %v662
        %v664 = vpop.f32.mrb[0].mxu0
        %665 = vmatprep.mubr.f32.mxu0 0.0
        %666 = vmatmul.mubr.f32.gmra.mrb[0].mxu0 %v562
        %v667 = vpop.f32.mrb[0].mxu0
        %v668 = vadd.f32 %v584, %v667
        %v669 = vpop.f32.mrb[0].mxu0
        %670 = vdwg.mxu0
        %671 = vst [vmem:[%s314] sm:$0xff] %v653
        %672 = vst [vmem:[%s314 + $0x8] sm:$0xff] %v658
        %673 = vst [vmem:[%s314 + $0x10] sm:$0xff] %v663
        %674 = vst [vmem:[%s314 + $0x18] sm:$0xff] %v668
        %s675 = sand.u32 %s183, 1
        %s676 = scalar_lea.sflag [#allocation4], %s675
        %s677 = sand.u32 %s183, 1
        %s678 = smul.addr %s677, 32
        %s679 = scalar_lea.vmem [#allocation7], %s678
        // Predicated region
        $region57: #{tpu_custom_call.1} parent=47 // pred_check
          %p680 = pneg %p193
        $region58: #{tpu_custom_call.1} parent=47 // pred_check_branch
          %682 = sbr.rel (%p680) target = $region60
        $region59: #{tpu_custom_call.1} parent=47 // pred_region
          %s683 = smul.u32 4, %s23
          %s684 = ssub.s32 7, %s683
          %p685 = scmp.lt.s32.totalorder %s684, 4
          %s686 = scalar_select %p685, %s684, 4
          %s687 = smul.u32 128, %s686
          %s689 = ssub.s32 512, %s687
          %690 = vsyncadd %s676, %s689
          %p691 = scmp.ne.s32.totalorder 0, %s687
          %s692 = smul.addr %s683, 128
          %s693 = scalar_lea.hbm %s7, %s692
          %s694 = smul.u32 8, %s686
          %s695 = sshll.u32 %s679, 4
          %s696 = int_to_ptr.vmem [resolvable:$true] %s695
          %s697 = sshll.u32 %s694, 4
          %701 = dma.vmem_to_hbm [thread:$0]  (%p691), %s696, %s697, %s693, %s676, 128, 128, 8
        $region60: #{tpu_custom_call.1} parent=47 // pred_fallthru
          _
      $region48: #{tpu_custom_call.1} parent=5 // pred_fallthru
        _
      %p702 = scmp.le.s32.totalorder 2, %s18
      // Predicated region
      $region61: #{tpu_custom_call.1} parent=5 // pred_check
        %p703 = pneg %p702
      $region62: #{tpu_custom_call.1} parent=5 // pred_check_branch
        %705 = sbr.rel (%p703) target = $region64
      $region63: #{tpu_custom_call.1} parent=5 // pred_region
        %s706 = ssub.s32 %s18, 2
        // Predicated region
        $region65: #{tpu_custom_call.1} parent=63 // pred_check
          %p707 = pneg %p199
        $region66: #{tpu_custom_call.1} parent=63 // pred_check_branch
          %709 = sbr.rel (%p707) target = $region68
        $region67: #{tpu_custom_call.1} parent=63 // pred_region
          %s710 = sand.u32 %s184, 1
          %s711 = scalar_lea.sflag [#allocation4], %s710
          %s712 = sand.u32 %s184, 1
          %s713 = smul.addr %s712, 32
          %s714 = scalar_lea.vmem [#allocation7], %s713
          %715 = dma.done %s711, 512
        $region68: #{tpu_custom_call.1} parent=63 // pred_fallthru
          _
      $region64: #{tpu_custom_call.1} parent=5 // pred_fallthru
        _
    $region6: #{tpu_custom_call.1} parent=1 // loop_footer
      %s22 = sadd.s32 1, %s18
    $region7: #{tpu_custom_call.1} parent=1 // loop_footer_branch
      %17 = sbr.rel target = $region3
    $region8: #{tpu_custom_call.1} parent=1 // loop_exit
      _
    %716 = vsyncpa [#allocation3], 1
    %s717 = scalar_lea.sflag [#allocation3], 1
    %718 = vsyncpa %s717, 1
    %719 = vsyncpa [#allocation6], 1
    %720 = vsyncpa [#allocation4], 1
    %s721 = scalar_lea.sflag [#allocation4], 1
    %722 = vsyncpa %s721, 1

// kernel: tpu_custom_call.1
$region0: #{tpu_custom_call.1}
  #allocation0 [shape = 'u32[]', space=smem, size = 0x4, offset = 0x4, fixed_abs, tag = 'smem constant byte address 0x4 - core index']
  #allocation1 [shape = 'u32[144,128]{1,0:T(1,128)}', space=vmem, size = 0x12000, scoped, tag = 'internal scratch']
  %s0 = inlined_call_operand.vmem [shape: f32[50,32], index: 0, kind: input, shape index: {}]
  %s1 = inlined_call_operand.vmem [shape: f32[32,128], index: 1, kind: input, shape index: {}]
  %s2 = inlined_call_operand.vmem [shape: f32[1,128], index: 2, kind: input, shape index: {}]
  %s3 = inlined_call_operand.hbm [shape: f32[128,128], index: 3, kind: input, shape index: {}]
  %s4 = inlined_call_operand.vmem [shape: f32[1,128], index: 4, kind: input, shape index: {}]
  %s5 = inlined_call_operand.hbm [shape: f32[128,128], index: 5, kind: input, shape index: {}]
  %s6 = inlined_call_operand.vmem [shape: f32[1,128], index: 6, kind: input, shape index: {}]
  %s7 = inlined_call_operand.hbm [shape: f32[50,128], index: 7, kind: output, shape index: {}]
  %s8 = sld [smem:[#allocation0]]
  $region69: #{tpu_custom_call.1} parent=0
    _
  %s10 = ssub.s32 1, %s8
  %s11 = scalar_select 0, %s10, %s8
  $region1: #{tpu_custom_call.1} parent=0
    #allocation2 [shape = 'u8[65536]{0}', space=vmem, size = 0x10000, scoped, tag = 'input window, operand 3, single buffered']
    #allocation3 [shape = 's32[2]{0}', space=sflag, size = 0x8, scoped, tag = 'scoped memory for tpu_custom_call.1']
    #allocation4 [shape = 's32[2]{0}', space=sflag, size = 0x8, scoped, tag = 'scoped memory for tpu_custom_call.1']
    #allocation5 [shape = 'u8[65536]{0}', space=vmem, size = 0x10000, scoped, tag = 'input window, operand 5, single buffered']
    #allocation6 [shape = 's32[1]{0}', space=sflag, size = 0x4, scoped, tag = 'scoped memory for tpu_custom_call.1']
    #allocation7 [shape = 'u8[32768]{0}', space=vmem, size = 0x8000, scoped, tag = 'output window, operand 0']
    %12 = vsyncpa [#allocation3], 0
    %13 = vsyncpa [#allocation6], 0
    %14 = vsyncpa [#allocation4], 0
    %s15 = scalar_lea.sflag [#allocation4], 1
    %16 = vsyncpa %s15, 0
    loop: start=0, step=1, limit=4
    $region2: #{tpu_custom_call.1} parent=1 // loop_pre_header
      _
    $region3: #{tpu_custom_call.1} parent=1 // loop_header
      %s18 = sphi 0, %s22
      %p19 = scmp.ge.s32.totalorder %s18, 4
      %s28 = sphi 0, %s30
      %s31 = sphi 0, %s28
      %s32 = sphi 0, %s31
      %s48 = sphi 0, %s32
      %s52 = sphi 0, %s52
      %s54 = sphi 0, %s52
      %s55 = sphi 0, %s54
      %s69 = sphi 0, %s55
      %s73 = sphi 0, %s73
      %s75 = sphi 0, %s73
      %s76 = sphi 0, %s75
      %s90 = sphi 0, %s76
      %s94 = sphi 0, %s94
      %s96 = sphi 0, %s94
      %s97 = sphi 0, %s96
      %s111 = sphi 0, %s97
      %s115 = sphi 0, %s115
      %s117 = sphi 0, %s115
      %s118 = sphi 0, %s117
      %s132 = sphi 0, %s118
      %s136 = sphi 0, %s136
      %s138 = sphi 0, %s136
      %s139 = sphi 0, %s138
      %s153 = sphi 0, %s139
      %s157 = sphi 0, %s157
      %s159 = sphi 0, %s157
      %s160 = sphi 0, %s159
      %s174 = sphi 0, %s160
      %s180 = sphi 0, %s182
      %s183 = sphi 0, %s180
      %s184 = sphi 0, %s183
      %s200 = sphi 0, %s184
    $region4: #{tpu_custom_call.1} parent=1 // loop_header_branch
      %21 = sbr.rel (%p19) target = $region8
    $region5: #{tpu_custom_call.1} parent=1 // loop_body
      %s23 = ssub.s32 %s18, 1
      %s24 = ssub.s32 %s18, 2
      %s25 = sadd.s32 %s18, 1
      %s26 = ssub.s32 %s18, %s25
      %p27 = scmp.eq.s32.totalorder %s26, 0
      %s29 = sadd.s32 %s28, 1
      %s30 = scalar_select %p27, %s28, %s29
      %p33 = pneg %p27
      %p34 = scmp.eq.s32.totalorder %s18, 1
      %p35 = por %p33, %p34
      %p36 = scmp.ne.s32.totalorder %s28, %s31
      %p37 = scmp.eq.s32.totalorder %s18, 0
      %p38 = por %p36, %p37
      %p39 = scmp.ne.s32.totalorder %s28, %s31
      %p40 = scmp.eq.s32.totalorder %s23, 1
      %p41 = por %p39, %p40
      %p42 = scmp.ne.s32.totalorder %s31, %s32
      %p43 = scmp.eq.s32.totalorder %s23, 0
      %p44 = por %p42, %p43
      %p45 = scmp.ne.s32.totalorder %s31, %s32
      %p46 = scmp.eq.s32.totalorder %s24, 1
      %p47 = por %p45, %p46
      %p49 = scmp.ne.s32.totalorder %s32, %s48
      %p50 = scmp.eq.s32.totalorder %s24, 0
      %p51 = por %p49, %p50
      %s53 = sadd.s32 %s52, 1
      %p56 = scmp.eq.s32.totalorder %s18, 1
      %p57 = scmp.ne.s32.totalorder %s52, %s54
      %p58 = scmp.eq.s32.totalorder %s18, 0
      %p59 = por %p57, %p58
      %p60 = scmp.ne.s32.totalorder %s52, %s54
      %p61 = scmp.eq.s32.totalorder %s23, 1
      %p62 = por %p60, %p61
      %p63 = scmp.ne.s32.totalorder %s54, %s55
      %p64 = scmp.eq.s32.totalorder %s23, 0
      %p65 = por %p63, %p64
      %p66 = scmp.ne.s32.totalorder %s54, %s55
      %p67 = scmp.eq.s32.totalorder %s24, 1
      %p68 = por %p66, %p67
      %p70 = scmp.ne.s32.totalorder %s55, %s69
      %p71 = scmp.eq.s32.totalorder %s24, 0
      %p72 = por %p70, %p71
      %s74 = sadd.s32 %s73, 1
      %p77 = scmp.eq.s32.totalorder %s18, 1
      %p78 = scmp.ne.s32.totalorder %s73, %s75
      %p79 = scmp.eq.s32.totalorder %s18, 0
      %p80 = por %p78, %p79
      %p81 = scmp.ne.s32.totalorder %s73, %s75
      %p82 = scmp.eq.s32.totalorder %s23, 1
      %p83 = por %p81, %p82
      %p84 = scmp.ne.s32.totalorder %s75, %s76
      %p85 = scmp.eq.s32.totalorder %s23, 0
      %p86 = por %p84, %p85
      %p87 = scmp.ne.s32.totalorder %s75, %s76
      %p88 = scmp.eq.s32.totalorder %s24, 1
      %p89 = por %p87, %p88
      %p91 = scmp.ne.s32.totalorder %s76, %s90
      %p92 = scmp.eq.s32.totalorder %s24, 0
      %p93 = por %p91, %p92
      %s95 = sadd.s32 %s94, 1
      %p98 = scmp.eq.s32.totalorder %s18, 1
      %p99 = scmp.ne.s32.totalorder %s94, %s96
      %p100 = scmp.eq.s32.totalorder %s18, 0
      %p101 = por %p99, %p100
      %p102 = scmp.ne.s32.totalorder %s94, %s96
      %p103 = scmp.eq.s32.totalorder %s23, 1
      %p104 = por %p102, %p103
      %p105 = scmp.ne.s32.totalorder %s96, %s97
      %p106 = scmp.eq.s32.totalorder %s23, 0
      %p107 = por %p105, %p106
      %p108 = scmp.ne.s32.totalorder %s96, %s97
      %p109 = scmp.eq.s32.totalorder %s24, 1
      %p110 = por %p108, %p109
      %p112 = scmp.ne.s32.totalorder %s97, %s111
      %p113 = scmp.eq.s32.totalorder %s24, 0
      %p114 = por %p112, %p113
      %s116 = sadd.s32 %s115, 1
      %p119 = scmp.eq.s32.totalorder %s18, 1
      %p120 = scmp.ne.s32.totalorder %s115, %s117
      %p121 = scmp.eq.s32.totalorder %s18, 0
      %p122 = por %p120, %p121
      %p123 = scmp.ne.s32.totalorder %s115, %s117
      %p124 = scmp.eq.s32.totalorder %s23, 1
      %p125 = por %p123, %p124
      %p126 = scmp.ne.s32.totalorder %s117, %s118
      %p127 = scmp.eq.s32.totalorder %s23, 0
      %p128 = por %p126, %p127
      %p129 = scmp.ne.s32.totalorder %s117, %s118
      %p130 = scmp.eq.s32.totalorder %s24, 1
      %p131 = por %p129, %p130
      %p133 = scmp.ne.s32.totalorder %s118, %s132
      %p134 = scmp.eq.s32.totalorder %s24, 0
      %p135 = por %p133, %p134
      %s137 = sadd.s32 %s136, 1
      %p140 = scmp.eq.s32.totalorder %s18, 1
      %p141 = scmp.ne.s32.totalorder %s136, %s138
      %p142 = scmp.eq.s32.totalorder %s18, 0
      %p143 = por %p141, %p142
      %p144 = scmp.ne.s32.totalorder %s136, %s138
      %p145 = scmp.eq.s32.totalorder %s23, 1
      %p146 = por %p144, %p145
      %p147 = scmp.ne.s32.totalorder %s138, %s139
      %p148 = scmp.eq.s32.totalorder %s23, 0
      %p149 = por %p147, %p148
      %p150 = scmp.ne.s32.totalorder %s138, %s139
      %p151 = scmp.eq.s32.totalorder %s24, 1
      %p152 = por %p150, %p151
      %p154 = scmp.ne.s32.totalorder %s139, %s153
      %p155 = scmp.eq.s32.totalorder %s24, 0
      %p156 = por %p154, %p155
      %s158 = sadd.s32 %s157, 1
      %p161 = scmp.eq.s32.totalorder %s18, 1
      %p162 = scmp.ne.s32.totalorder %s157, %s159
      %p163 = scmp.eq.s32.totalorder %s18, 0
      %p164 = por %p162, %p163
      %p165 = scmp.ne.s32.totalorder %s157, %s159
      %p166 = scmp.eq.s32.totalorder %s23, 1
      %p167 = por %p165, %p166
      %p168 = scmp.ne.s32.totalorder %s159, %s160
      %p169 = scmp.eq.s32.totalorder %s23, 0
      %p170 = por %p168, %p169
      %p171 = scmp.ne.s32.totalorder %s159, %s160
      %p172 = scmp.eq.s32.totalorder %s24, 1
      %p173 = por %p171, %p172
      %p175 = scmp.ne.s32.totalorder %s160, %s174
      %p176 = scmp.eq.s32.totalorder %s24, 0
      %p177 = por %p175, %p176
      %s178 = ssub.s32 %s18, %s25
      %p179 = scmp.eq.s32.totalorder %s178, 0
      %s181 = sadd.s32 %s180, 1
      %s182 = scalar_select %p179, %s180, %s181
      %p185 = pneg %p179
      %p186 = scmp.eq.s32.totalorder %s18, 1
      %p187 = por %p185, %p186
      %p188 = scmp.ne.s32.totalorder %s180, %s183
      %p189 = scmp.eq.s32.totalorder %s18, 0
      %p190 = por %p188, %p189
      %p191 = scmp.ne.s32.totalorder %s180, %s183
      %p192 = scmp.eq.s32.totalorder %s23, 1
      %p193 = por %p191, %p192
      %p194 = scmp.ne.s32.totalorder %s183, %s184
      %p195 = scmp.eq.s32.totalorder %s23, 0
      %p196 = por %p194, %p195
      %p197 = scmp.ne.s32.totalorder %s183, %s184
      %p198 = scmp.eq.s32.totalorder %s24, 1
      %p199 = por %p197, %p198
      %p201 = scmp.ne.s32.totalorder %s184, %s200
      %p202 = scmp.eq.s32.totalorder %s24, 0
      %p203 = por %p201, %p202
      %p204 = scmp.le.s32.totalorder 1, %s18
      %p205 = scmp.lt.s32.totalorder %s18, 3
      %p206 = pnand %p204, %p205
      %p207 = pneg %p206
      // Predicated region
      $region9: #{tpu_custom_call.1} parent=5 // pred_check
        _
      $region10: #{tpu_custom_call.1} parent=5 // pred_check_branch
        %209 = sbr.rel (%p206) target = $region12
      $region11: #{tpu_custom_call.1} parent=5 // pred_region
        %s210 = ssub.s32 %s18, 1
        // Predicated region
        $region13: #{tpu_custom_call.1} parent=11 // pred_check
          %p211 = pneg %p65
        $region14: #{tpu_custom_call.1} parent=11 // pred_check_branch
          %213 = sbr.rel (%p211) target = $region16
        $region15: #{tpu_custom_call.1} parent=11 // pred_region
          _
        $region16: #{tpu_custom_call.1} parent=11 // pred_fallthru
          _
        // Predicated region
        $region17: #{tpu_custom_call.1} parent=11 // pred_check
          %p214 = pneg %p86
        $region18: #{tpu_custom_call.1} parent=11 // pred_check_branch
          %216 = sbr.rel (%p214) target = $region20
        $region19: #{tpu_custom_call.1} parent=11 // pred_region
          _
        $region20: #{tpu_custom_call.1} parent=11 // pred_fallthru
          _
        // Predicated region
        $region21: #{tpu_custom_call.1} parent=11 // pred_check
          %p217 = pneg %p107
        $region22: #{tpu_custom_call.1} parent=11 // pred_check_branch
          %219 = sbr.rel (%p217) target = $region24
        $region23: #{tpu_custom_call.1} parent=11 // pred_region
          %s221 = ssub.s32 2048, 2048
          %222 = vsyncadd [#allocation3], %s221
          %s223 = sshll.u32 [#allocation2], 4
          %s224 = int_to_ptr.vmem [resolvable:$true] %s223
          %229 = dma.hbm_to_vmem [thread:$0]  %s3, 2048, %s224, [#allocation3], 128, 128, 8
        $region24: #{tpu_custom_call.1} parent=11 // pred_fallthru
          _
        // Predicated region
        $region25: #{tpu_custom_call.1} parent=11 // pred_check
          %p230 = pneg %p128
        $region26: #{tpu_custom_call.1} parent=11 // pred_check_branch
          %232 = sbr.rel (%p230) target = $region28
        $region27: #{tpu_custom_call.1} parent=11 // pred_region
          _
        $region28: #{tpu_custom_call.1} parent=11 // pred_fallthru
          _
        // Predicated region
        $region29: #{tpu_custom_call.1} parent=11 // pred_check
          %p233 = pneg %p149
        $region30: #{tpu_custom_call.1} parent=11 // pred_check_branch
          %235 = sbr.rel (%p233) target = $region32
        $region31: #{tpu_custom_call.1} parent=11 // pred_region
          %s237 = ssub.s32 2048, 2048
          %238 = vsyncadd [#allocation6], %s237
          %s239 = sshll.u32 [#allocation5], 4
          %s240 = int_to_ptr.vmem [resolvable:$true] %s239
          %245 = dma.hbm_to_vmem [thread:$0]  %s5, 2048, %s240, [#allocation6], 128, 128, 8
        $region32: #{tpu_custom_call.1} parent=11 // pred_fallthru
          _
        // Predicated region
        $region33: #{tpu_custom_call.1} parent=11 // pred_check
          %p246 = pneg %p170
        $region34: #{tpu_custom_call.1} parent=11 // pred_check_branch
          %248 = sbr.rel (%p246) target = $region36
        $region35: #{tpu_custom_call.1} parent=11 // pred_region
          _
        $region36: #{tpu_custom_call.1} parent=11 // pred_fallthru
          _
      $region12: #{tpu_custom_call.1} parent=5 // pred_fallthru
        _
      %p249 = scmp.lt.s32.totalorder %s18, 2
      // Predicated region
      $region37: #{tpu_custom_call.1} parent=5 // pred_check
        %p250 = pneg %p249
      $region38: #{tpu_custom_call.1} parent=5 // pred_check_branch
        %252 = sbr.rel (%p250) target = $region40
      $region39: #{tpu_custom_call.1} parent=5 // pred_region
        // Predicated region
        $region41: #{tpu_custom_call.1} parent=39 // pred_check
          %p253 = pneg %p38
        $region42: #{tpu_custom_call.1} parent=39 // pred_check_branch
          %255 = sbr.rel (%p253) target = $region44
        $region43: #{tpu_custom_call.1} parent=39 // pred_region
          %s256 = smul.u32 4, %s18
          %s257 = ssub.s32 7, %s256
          %p258 = scmp.lt.s32.totalorder %s257, 4
          %s259 = scalar_select %p258, %s257, 4
          %s260 = smul.u32 128, %s259
          %p261 = scmp.lt.s32.totalorder %s256, 6
          %s262 = scalar_select %p261, %s256, 6
          %s263 = smul.addr %s262, 8
          %s264 = scalar_lea.vmem %s0, %s263
          %s265 = smul.u32 4, %s18
          %s266 = ssub.s32 7, %s265
          %p267 = scmp.lt.s32.totalorder %s266, 4
          %s268 = scalar_select %p267, %s266, 4
          %s269 = smul.u32 128, %s268
        $region44: #{tpu_custom_call.1} parent=39 // pred_fallthru
          _
      $region40: #{tpu_custom_call.1} parent=5 // pred_fallthru
        _
      %p270 = scmp.le.s32.totalorder 1, %s18
      %p271 = scmp.lt.s32.totalorder %s18, 3
      %p272 = pnand %p270, %p271
      %p273 = pneg %p272
      // Predicated region
      $region45: #{tpu_custom_call.1} parent=5 // pred_check
        _
      $region46: #{tpu_custom_call.1} parent=5 // pred_check_branch
        %275 = sbr.rel (%p272) target = $region48
      $region47: #{tpu_custom_call.1} parent=5 // pred_region
        %s276 = ssub.s32 %s18, 1
        // Predicated region
        $region49: #{tpu_custom_call.1} parent=47 // pred_check
          %p277 = pneg %p107
        $region50: #{tpu_custom_call.1} parent=47 // pred_check_branch
          %279 = sbr.rel (%p277) target = $region52
        $region51: #{tpu_custom_call.1} parent=47 // pred_region
          %280 = dma.done [#allocation3], 2048
        $region52: #{tpu_custom_call.1} parent=47 // pred_fallthru
          _
        // Predicated region
        $region53: #{tpu_custom_call.1} parent=47 // pred_check
          %p281 = pneg %p149
        $region54: #{tpu_custom_call.1} parent=47 // pred_check_branch
          %283 = sbr.rel (%p281) target = $region56
        $region55: #{tpu_custom_call.1} parent=47 // pred_region
          %284 = dma.done [#allocation6], 2048
        $region56: #{tpu_custom_call.1} parent=47 // pred_fallthru
          _
        %s285 = smul.u32 4, %s23
        %s286 = ssub.s32 7, %s285
        %p287 = scmp.lt.s32.totalorder %s286, 4
        %s288 = scalar_select %p287, %s286, 4
        %s289 = smul.u32 128, %s288
        %p290 = scmp.lt.s32.totalorder %s285, 6
        %s291 = scalar_select %p290, %s285, 6
        %s292 = smul.addr %s291, 8
        %s293 = scalar_lea.vmem %s0, %s292
        %p294 = pneg %p44
        %p295 = pneg %p41
        %p296 = pneg %p65
        %p297 = pneg %p62
        %p298 = pneg %p86
        %p299 = pneg %p83
        %p300 = pneg %p107
        %p301 = pneg %p104
        %p302 = pneg %p128
        %p303 = pneg %p125
        %p304 = pneg %p149
        %p305 = pneg %p146
        %p306 = pneg %p170
        %p307 = pneg %p167
        %p308 = pneg %p196
        %p309 = pneg %p193
        %s310 = sand.u32 %s183, 1
        %s311 = scalar_lea.sflag [#allocation4], %s310
        %s312 = sand.u32 %s183, 1
        %s313 = smul.addr %s312, 32
        %s314 = scalar_lea.vmem [#allocation7], %s313
        %s315 = smul.u32 4, %s23
        %s316 = ssub.s32 7, %s315
        %p317 = scmp.lt.s32.totalorder %s316, 4
        %s318 = scalar_select %p317, %s316, 4
        %s319 = smul.u32 128, %s318
        %p320 = scmp.lt.s32.totalorder %s315, 6
        %s321 = scalar_select %p320, %s315, 6
        %s322 = smul.addr %s321, 8
        %s323 = scalar_lea.vmem %s0, %s322
        %s324 = smul.u32 4, %s23
        %s325 = ssub.s32 7, %s324
        %p326 = scmp.lt.s32.totalorder %s325, 4
        %s327 = scalar_select %p326, %s325, 4
        %s328 = smul.u32 128, %s327
        %s329 = smul.u32 4, %s23
        %s330 = ssub.s32 7, %s329
        %p331 = scmp.lt.s32.totalorder %s330, 4
        %s332 = scalar_select %p331, %s330, 4
        %s333 = smul.u32 128, %s332
        %v334 = vld [vmem:[%s323] sm:$0xff]
        %v335 = vld [vmem:[%s323 + $0x8] sm:$0xff]
        %v336 = vld [vmem:[%s323 + $0x10] sm:$0xff]
        %v337 = vld [vmem:[%s323 + $0x18] sm:$0xff]
        %v338 = vld [vmem:[%s1] sm:$0xff]
        %v339 = vld [vmem:[%s1 + $0x8] sm:$0xff]
        %v340 = vld [vmem:[%s1 + $0x10] sm:$0xff]
        %v341 = vld [vmem:[%s1 + $0x18] sm:$0xff]
        %v342 = vld [vmem:[%s2] sm:$0x1]
        %v344 = vlaneseq
        %v345 = vshrl.u32 %v344, 7
        %v346 = vsub.s32 0, %v345
        %v347 = vrot.slane %v342, %v346
        %vm349 = vcmask 261120
        %v351 = vsel %vm349, %v334, 0
        %v354 = vsel %vm349, %v335, 0
        %v357 = vsel %vm349, %v336, 0
        %v360 = vsel %vm349, %v337, 0
        %362 = vmatprep.subr.mxu0 0.0
        %363 = vmatpush1.msra.mxu0 %v338
        %364 = vmatprep.subr.mxu0 0.0
        %365 = vmatpush1.msra.mxu0 %v339
        %366 = vmatprep.subr.mxu0 0.0
        %367 = vmatpush1.msra.mxu0 %v340
        %368 = vmatprep.subr.mxu0 0.0
        %369 = vmatpush1.msra.mxu0 %v341
        %370 = vmatprep.subr.mxu0 0.0
        %371 = vmatpush1.msra.mxu0 0.0
        %372 = vmatprep.subr.mxu0 0.0
        %373 = vmatpush1.msra.mxu0 0.0
        %374 = vmatprep.subr.mxu0 0.0
        %375 = vmatpush1.msra.mxu0 0.0
        %376 = vmatprep.subr.mxu0 0.0
        %377 = vmatpush1.msra.mxu0 0.0
        %378 = vmatprep.subr.mxu0 0.0
        %379 = vmatpush1.msra.mxu0 0.0
        %380 = vmatprep.subr.mxu0 0.0
        %381 = vmatpush1.msra.mxu0 0.0
        %382 = vmatprep.subr.mxu0 0.0
        %383 = vmatpush1.msra.mxu0 0.0
        %384 = vmatprep.subr.mxu0 0.0
        %385 = vmatpush1.msra.mxu0 0.0
        %386 = vmatprep.subr.mxu0 0.0
        %387 = vmatpush1.msra.mxu0 0.0
        %388 = vmatprep.subr.mxu0 0.0
        %389 = vmatpush1.msra.mxu0 0.0
        %390 = vmatprep.subr.mxu0 0.0
        %391 = vmatpush1.msra.mxu0 0.0
        %392 = vmatprep.subr.mxu0 0.0
        %393 = vmatpush1.msra.mxu0 0.0
        %394 = vmatprep.subr.mxu0 0.0
        %395 = vmatpush1.msra.mxu0 0.0
        %396 = vmatprep.subr.mxu0 0.0
        %397 = vmatpush1.msra.mxu0 0.0
        %398 = vmatprep.subr.mxu0 0.0
        %399 = vmatpush1.msra.mxu0 0.0
        %400 = vmatprep.subr.mxu0 0.0
        %401 = vmatpush1.msra.mxu0 0.0
        %402 = vmatprep.subr.mxu0 0.0
        %403 = vmatpush1.msra.mxu0 0.0
        %404 = vmatprep.subr.mxu0 0.0
        %405 = vmatpush1.msra.mxu0 0.0
        %406 = vmatprep.subr.mxu0 0.0
        %407 = vmatpush1.msra.mxu0 0.0
        %408 = vmatprep.subr.mxu0 0.0
        %409 = vmatpush1.msra.mxu0 0.0
        %410 = vmatprep.subr.mxu0 0.0
        %411 = vmatpush1.msra.mxu0 0.0
        %412 = vmatprep.subr.mxu0 0.0
        %413 = vmatpush1.msra.mxu0 0.0
        %414 = vmatprep.subr.mxu0 0.0
        %415 = vmatpush1.msra.mxu0 0.0
        %416 = vmatprep.subr.mxu0 0.0
        %417 = vmatpush1.msra.mxu0 0.0
        %418 = vmatprep.subr.mxu0 0.0
        %419 = vmatpush1.msra.mxu0 0.0
        %420 = vmatprep.subr.mxu0 0.0
        %421 = vmatpush1.msra.mxu0 0.0
        %422 = vmatprep.subr.mxu0 0.0
        %423 = vmatpush1.msra.mxu0 0.0
        %424 = vmatprep.subr.mxu0 0.0
        %425 = vmatpush1.msra.mxu0 0.0
        %426 = vmatprep.mubr.f32.mxu0 0.0
        %427 = vmatmul.mubr.f32.gmra.mrb[0].mxu0 %v351
        %v428 = vpop.f32.mrb[0].mxu0
        %v429 = vadd.f32 %v347, %v428
        %v430 = vpop.f32.mrb[0].mxu0
        %431 = vmatprep.mubr.f32.mxu0 0.0
        %432 = vmatmul.mubr.f32.gmra.mrb[0].mxu0 %v354
        %v433 = vpop.f32.mrb[0].mxu0
        %v434 = vadd.f32 %v347, %v433
        %v435 = vpop.f32.mrb[0].mxu0
        %436 = vmatprep.mubr.f32.mxu0 0.0
        %437 = vmatmul.mubr.f32.gmra.mrb[0].mxu0 %v357
        %v438 = vpop.f32.mrb[0].mxu0
        %v439 = vadd.f32 %v347, %v438
        %v440 = vpop.f32.mrb[0].mxu0
        %441 = vmatprep.mubr.f32.mxu0 0.0
        %442 = vmatmul.mubr.f32.gmra.mrb[0].mxu0 %v360
        %v443 = vpop.f32.mrb[0].mxu0
        %v444 = vadd.f32 %v347, %v443
        %v445 = vpop.f32.mrb[0].mxu0
        %446 = vdwg.mxu0
        %v447 = vmax.f32 %v429, 0.0
        %v448 = vmax.f32 %v434, 0.0
        %v449 = vmax.f32 %v439, 0.0
        %v450 = vmax.f32 %v444, 0.0
        %v451 = vld [vmem:[#allocation2] sm:$0xff]
        %v452 = vld [vmem:[#allocation2 + $0x8] sm:$0xff]
        %v453 = vld [vmem:[#allocation2 + $0x10] sm:$0xff]
        %v454 = vld [vmem:[#allocation2 + $0x18] sm:$0xff]
        %v455 = vld [vmem:[#allocation2 + $0x20] sm:$0xff]
        %v456 = vld [vmem:[#allocation2 + $0x28] sm:$0xff]
        %v457 = vld [vmem:[#allocation2 + $0x30] sm:$0xff]
        %v458 = vld [vmem:[#allocation2 + $0x38] sm:$0xff]
        %v459 = vld [vmem:[#allocation2 + $0x40] sm:$0xff]
        %v460 = vld [vmem:[#allocation2 + $0x48] sm:$0xff]
        %v461 = vld [vmem:[#allocation2 + $0x50] sm:$0xff]
        %v462 = vld [vmem:[#allocation2 + $0x58] sm:$0xff]
        %v463 = vld [vmem:[#allocation2 + $0x60] sm:$0xff]
        %v464 = vld [vmem:[#allocation2 + $0x68] sm:$0xff]
        %v465 = vld [vmem:[#allocation2 + $0x70] sm:$0xff]
        %v466 = vld [vmem:[#allocation2 + $0x78] sm:$0xff]
        %v467 = vld [vmem:[%s4] sm:$0x1]
        %v469 = vlaneseq
        %v470 = vshrl.u32 %v469, 7
        %v471 = vsub.s32 0, %v470
        %v472 = vrot.slane %v467, %v471
        %474 = vmatprep.subr.mxu0 0.0
        %475 = vmatpush1.msra.mxu0 %v451
        %476 = vmatprep.subr.mxu0 0.0
        %477 = vmatpush1.msra.mxu0 %v452
        %478 = vmatprep.subr.mxu0 0.0
        %479 = vmatpush1.msra.mxu0 %v453
        %480 = vmatprep.subr.mxu0 0.0
        %481 = vmatpush1.msra.mxu0 %v454
        %482 = vmatprep.subr.mxu0 0.0
        %483 = vmatpush1.msra.mxu0 %v455
        %484 = vmatprep.subr.mxu0 0.0
        %485 = vmatpush1.msra.mxu0 %v456
        %486 = vmatprep.subr.mxu0 0.0
        %487 = vmatpush1.msra.mxu0 %v457
        %488 = vmatprep.subr.mxu0 0.0
        %489 = vmatpush1.msra.mxu0 %v458
        %490 = vmatprep.subr.mxu0 0.0
        %491 = vmatpush1.msra.mxu0 %v459
        %492 = vmatprep.subr.mxu0 0.0
        %493 = vmatpush1.msra.mxu0 %v460
        %494 = vmatprep.subr.mxu0 0.0
        %495 = vmatpush1.msra.mxu0 %v461
        %496 = vmatprep.subr.mxu0 0.0
        %497 = vmatpush1.msra.mxu0 %v462
        %498 = vmatprep.subr.mxu0 0.0
        %499 = vmatpush1.msra.mxu0 %v463
        %500 = vmatprep.subr.mxu0 0.0
        %501 = vmatpush1.msra.mxu0 %v464
        %502 = vmatprep.subr.mxu0 0.0
        %503 = vmatpush1.msra.mxu0 %v465
        %504 = vmatprep.subr.mxu0 0.0
        %505 = vmatpush1.msra.mxu0 %v466
        %506 = vmatprep.subr.mxu0 0.0
        %507 = vmatpush1.msra.mxu0 0.0
        %508 = vmatprep.subr.mxu0 0.0
        %509 = vmatpush1.msra.mxu0 0.0
        %510 = vmatprep.subr.mxu0 0.0
        %511 = vmatpush1.msra.mxu0 0.0
        %512 = vmatprep.subr.mxu0 0.0
        %513 = vmatpush1.msra.mxu0 0.0
        %514 = vmatprep.subr.mxu0 0.0
        %515 = vmatpush1.msra.mxu0 0.0
        %516 = vmatprep.subr.mxu0 0.0
        %517 = vmatpush1.msra.mxu0 0.0
        %518 = vmatprep.subr.mxu0 0.0
        %519 = vmatpush1.msra.mxu0 0.0
        %520 = vmatprep.subr.mxu0 0.0
        %521 = vmatpush1.msra.mxu0 0.0
        %522 = vmatprep.subr.mxu0 0.0
        %523 = vmatpush1.msra.mxu0 0.0
        %524 = vmatprep.subr.mxu0 0.0
        %525 = vmatpush1.msra.mxu0 0.0
        %526 = vmatprep.subr.mxu0 0.0
        %527 = vmatpush1.msra.mxu0 0.0
        %528 = vmatprep.subr.mxu0 0.0
        %529 = vmatpush1.msra.mxu0 0.0
        %530 = vmatprep.subr.mxu0 0.0
        %531 = vmatpush1.msra.mxu0 0.0
        %532 = vmatprep.subr.mxu0 0.0
        %533 = vmatpush1.msra.mxu0 0.0
        %534 = vmatprep.subr.mxu0 0.0
        %535 = vmatpush1.msra.mxu0 0.0
        %536 = vmatprep.subr.mxu0 0.0
        %537 = vmatpush1.msra.mxu0 0.0
        %538 = vmatprep.mubr.f32.mxu0 0.0
        %539 = vmatmul.mubr.f32.gmra.mrb[0].mxu0 %v447
        %v540 = vpop.f32.mrb[0].mxu0
        %v541 = vadd.f32 %v472, %v540
        %v542 = vpop.f32.mrb[0].mxu0
        %543 = vmatprep.mubr.f32.mxu0 0.0
        %544 = vmatmul.mubr.f32.gmra.mrb[0].mxu0 %v448
        %v545 = vpop.f32.mrb[0].mxu0
        %v546 = vadd.f32 %v472, %v545
        %v547 = vpop.f32.mrb[0].mxu0
        %548 = vmatprep.mubr.f32.mxu0 0.0
        %549 = vmatmul.mubr.f32.gmra.mrb[0].mxu0 %v449
        %v550 = vpop.f32.mrb[0].mxu0
        %v551 = vadd.f32 %v472, %v550
        %v552 = vpop.f32.mrb[0].mxu0
        %553 = vmatprep.mubr.f32.mxu0 0.0
        %554 = vmatmul.mubr.f32.gmra.mrb[0].mxu0 %v450
        %v555 = vpop.f32.mrb[0].mxu0
        %v556 = vadd.f32 %v472, %v555
        %v557 = vpop.f32.mrb[0].mxu0
        %558 = vdwg.mxu0
        %v559 = vmax.f32 %v541, 0.0
        %v560 = vmax.f32 %v546, 0.0
        %v561 = vmax.f32 %v551, 0.0
        %v562 = vmax.f32 %v556, 0.0
        %v563 = vld [vmem:[#allocation5] sm:$0xff]
        %v564 = vld [vmem:[#allocation5 + $0x8] sm:$0xff]
        %v565 = vld [vmem:[#allocation5 + $0x10] sm:$0xff]
        %v566 = vld [vmem:[#allocation5 + $0x18] sm:$0xff]
        %v567 = vld [vmem:[#allocation5 + $0x20] sm:$0xff]
        %v568 = vld [vmem:[#allocation5 + $0x28] sm:$0xff]
        %v569 = vld [vmem:[#allocation5 + $0x30] sm:$0xff]
        %v570 = vld [vmem:[#allocation5 + $0x38] sm:$0xff]
        %v571 = vld [vmem:[#allocation5 + $0x40] sm:$0xff]
        %v572 = vld [vmem:[#allocation5 + $0x48] sm:$0xff]
        %v573 = vld [vmem:[#allocation5 + $0x50] sm:$0xff]
        %v574 = vld [vmem:[#allocation5 + $0x58] sm:$0xff]
        %v575 = vld [vmem:[#allocation5 + $0x60] sm:$0xff]
        %v576 = vld [vmem:[#allocation5 + $0x68] sm:$0xff]
        %v577 = vld [vmem:[#allocation5 + $0x70] sm:$0xff]
        %v578 = vld [vmem:[#allocation5 + $0x78] sm:$0xff]
        %v579 = vld [vmem:[%s6] sm:$0x1]
        %v581 = vlaneseq
        %v582 = vshrl.u32 %v581, 7
        %v583 = vsub.s32 0, %v582
        %v584 = vrot.slane %v579, %v583
        %586 = vmatprep.subr.mxu0 0.0
        %587 = vmatpush1.msra.mxu0 %v563
        %588 = vmatprep.subr.mxu0 0.0
        %589 = vmatpush1.msra.mxu0 %v564
        %590 = vmatprep.subr.mxu0 0.0
        %591 = vmatpush1.msra.mxu0 %v565
        %592 = vmatprep.subr.mxu0 0.0
        %593 = vmatpush1.msra.mxu0 %v566
        %594 = vmatprep.subr.mxu0 0.0
        %595 = vmatpush1.msra.mxu0 %v567
        %596 = vmatprep.subr.mxu0 0.0
        %597 = vmatpush1.msra.mxu0 %v568
        %598 = vmatprep.subr.mxu0 0.0
        %599 = vmatpush1.msra.mxu0 %v569
        %600 = vmatprep.subr.mxu0 0.0
        %601 = vmatpush1.msra.mxu0 %v570
        %602 = vmatprep.subr.mxu0 0.0
        %603 = vmatpush1.msra.mxu0 %v571
        %604 = vmatprep.subr.mxu0 0.0
        %605 = vmatpush1.msra.mxu0 %v572
        %606 = vmatprep.subr.mxu0 0.0
        %607 = vmatpush1.msra.mxu0 %v573
        %608 = vmatprep.subr.mxu0 0.0
        %609 = vmatpush1.msra.mxu0 %v574
        %610 = vmatprep.subr.mxu0 0.0
        %611 = vmatpush1.msra.mxu0 %v575
        %612 = vmatprep.subr.mxu0 0.0
        %613 = vmatpush1.msra.mxu0 %v576
        %614 = vmatprep.subr.mxu0 0.0
        %615 = vmatpush1.msra.mxu0 %v577
        %616 = vmatprep.subr.mxu0 0.0
        %617 = vmatpush1.msra.mxu0 %v578
        %618 = vmatprep.subr.mxu0 0.0
        %619 = vmatpush1.msra.mxu0 0.0
        %620 = vmatprep.subr.mxu0 0.0
        %621 = vmatpush1.msra.mxu0 0.0
        %622 = vmatprep.subr.mxu0 0.0
        %623 = vmatpush1.msra.mxu0 0.0
        %624 = vmatprep.subr.mxu0 0.0
        %625 = vmatpush1.msra.mxu0 0.0
        %626 = vmatprep.subr.mxu0 0.0
        %627 = vmatpush1.msra.mxu0 0.0
        %628 = vmatprep.subr.mxu0 0.0
        %629 = vmatpush1.msra.mxu0 0.0
        %630 = vmatprep.subr.mxu0 0.0
        %631 = vmatpush1.msra.mxu0 0.0
        %632 = vmatprep.subr.mxu0 0.0
        %633 = vmatpush1.msra.mxu0 0.0
        %634 = vmatprep.subr.mxu0 0.0
        %635 = vmatpush1.msra.mxu0 0.0
        %636 = vmatprep.subr.mxu0 0.0
        %637 = vmatpush1.msra.mxu0 0.0
        %638 = vmatprep.subr.mxu0 0.0
        %639 = vmatpush1.msra.mxu0 0.0
        %640 = vmatprep.subr.mxu0 0.0
        %641 = vmatpush1.msra.mxu0 0.0
        %642 = vmatprep.subr.mxu0 0.0
        %643 = vmatpush1.msra.mxu0 0.0
        %644 = vmatprep.subr.mxu0 0.0
        %645 = vmatpush1.msra.mxu0 0.0
        %646 = vmatprep.subr.mxu0 0.0
        %647 = vmatpush1.msra.mxu0 0.0
        %648 = vmatprep.subr.mxu0 0.0
        %649 = vmatpush1.msra.mxu0 0.0
        %650 = vmatprep.mubr.f32.mxu0 0.0
        %651 = vmatmul.mubr.f32.gmra.mrb[0].mxu0 %v559
        %v652 = vpop.f32.mrb[0].mxu0
        %v653 = vadd.f32 %v584, %v652
        %v654 = vpop.f32.mrb[0].mxu0
        %655 = vmatprep.mubr.f32.mxu0 0.0
        %656 = vmatmul.mubr.f32.gmra.mrb[0].mxu0 %v560
        %v657 = vpop.f32.mrb[0].mxu0
        %v658 = vadd.f32 %v584, %v657
        %v659 = vpop.f32.mrb[0].mxu0
        %660 = vmatprep.mubr.f32.mxu0 0.0
        %661 = vmatmul.mubr.f32.gmra.mrb[0].mxu0 %v561
        %v662 = vpop.f32.mrb[0].mxu0
        %v663 = vadd.f32 %v584, %v662
        %v664 = vpop.f32.mrb[0].mxu0
        %665 = vmatprep.mubr.f32.mxu0 0.0
        %666 = vmatmul.mubr.f32.gmra.mrb[0].mxu0 %v562
        %v667 = vpop.f32.mrb[0].mxu0
        %v668 = vadd.f32 %v584, %v667
        %v669 = vpop.f32.mrb[0].mxu0
        %670 = vdwg.mxu0
        %671 = vst [vmem:[%s314] sm:$0xff] %v653
        %672 = vst [vmem:[%s314 + $0x8] sm:$0xff] %v658
        %673 = vst [vmem:[%s314 + $0x10] sm:$0xff] %v663
        %674 = vst [vmem:[%s314 + $0x18] sm:$0xff] %v668
        %s675 = sand.u32 %s183, 1
        %s676 = scalar_lea.sflag [#allocation4], %s675
        %s677 = sand.u32 %s183, 1
        %s678 = smul.addr %s677, 32
        %s679 = scalar_lea.vmem [#allocation7], %s678
        // Predicated region
        $region57: #{tpu_custom_call.1} parent=47 // pred_check
          %p680 = pneg %p193
        $region58: #{tpu_custom_call.1} parent=47 // pred_check_branch
          %682 = sbr.rel (%p680) target = $region60
        $region59: #{tpu_custom_call.1} parent=47 // pred_region
          %s683 = smul.u32 4, %s23
          %s684 = ssub.s32 7, %s683
          %p685 = scmp.lt.s32.totalorder %s684, 4
          %s686 = scalar_select %p685, %s684, 4
          %s687 = smul.u32 128, %s686
          %s689 = ssub.s32 512, %s687
          %690 = vsyncadd %s676, %s689
          %p691 = scmp.ne.s32.totalorder 0, %s687
          %s692 = smul.addr %s683, 128
          %s693 = scalar_lea.hbm %s7, %s692
          %s694 = smul.u32 8, %s686
          %s695 = sshll.u32 %s679, 4
          %s696 = int_to_ptr.vmem [resolvable:$true] %s695
          %s697 = sshll.u32 %s694, 4
          %701 = dma.vmem_to_hbm [thread:$0]  (%p691), %s696, %s697, %s693, %s676, 128, 128, 8
        $region60: #{tpu_custom_call.1} parent=47 // pred_fallthru
          _
      $region48: #{tpu_custom_call.1} parent=5 // pred_fallthru
        _
      %p702 = scmp.le.s32.totalorder 2, %s18
      // Predicated region
      $region61: #{tpu_custom_call.1} parent=5 // pred_check
        %p703 = pneg %p702
      $region62: #{tpu_custom_call.1} parent=5 // pred_check_branch
        %705 = sbr.rel (%p703) target = $region64
      $region63: #{tpu_custom_call.1} parent=5 // pred_region
        %s706 = ssub.s32 %s18, 2
        // Predicated region
        $region65: #{tpu_custom_call.1} parent=63 // pred_check
          %p707 = pneg %p199
        $region66: #{tpu_custom_call.1} parent=63 // pred_check_branch
          %709 = sbr.rel (%p707) target = $region68
        $region67: #{tpu_custom_call.1} parent=63 // pred_region
          %s710 = sand.u32 %s184, 1
          %s711 = scalar_lea.sflag [#allocation4], %s710
          %s712 = sand.u32 %s184, 1
          %s713 = smul.addr %s712, 32
          %s714 = scalar_lea.vmem [#allocation7], %s713
          %715 = dma.done %s711, 512
        $region68: #{tpu_custom_call.1} parent=63 // pred_fallthru
          _
      $region64: #{tpu_custom_call.1} parent=5 // pred_fallthru
        _
    $region6: #{tpu_custom_call.1} parent=1 // loop_footer
      %s22 = sadd.s32 1, %s18
    $region7: #{tpu_custom_call.1} parent=1 // loop_footer_branch
      %17 = sbr.rel target = $region3
    $region8: #{tpu_custom_call.1} parent=1 // loop_exit
      _
    %716 = vsyncpa [#allocation3], 1
    %s717 = scalar_lea.sflag [#allocation3], 1
    %718 = vsyncpa %s717, 1
    %719 = vsyncpa [#allocation6], 1
    %720 = vsyncpa [#allocation4], 1
    %s721 = scalar_lea.sflag [#allocation4], 1
    %722 = vsyncpa %s721, 1

</llo_original>
